<compile_context>
chip_gen: v5e
topology: v5e:2x2
jax: 0.10.0
libtpu: 0.0.40
codegen_flags: <defaults>
</compile_context>

<pallas_src>
import functools

import jax
import jax.numpy as jnp
import numpy as np
from jax.experimental import pallas as pl
from jax.experimental.pallas import tpu as pltpu


# --------------------------------- kernel ----------------------------------

def _feature_kernel(x_ref,
                    w1_ref, b1_ref, w2_ref, b2_ref,
                    w3_ref, b3_ref, w4_ref, b4_ref,
                    spatial_ref, gap_ref, acc_ref,
                    *, hw_valid, t_hw):
    i = pl.program_id(1)

    @pl.when(i == 0)
    def _():
        acc_ref[...] = jnp.zeros_like(acc_ref)

    x = x_ref[...]                                                 # (C_in, t_hw) bf16

    # refinement: (Conv1x1 ∘ BN folded) -> ReLU, (Conv1x1 ∘ BN folded) -> ReLU
    h = jnp.dot(w1_ref[...], x, preferred_element_type=jnp.float32) + b1_ref[...]
    h = jnp.maximum(h, 0.0).astype(jnp.bfloat16)                   # (C_mid, t_hw)
    r = jnp.dot(w2_ref[...], h, preferred_element_type=jnp.float32) + b2_ref[...]
    refined = jnp.maximum(r, 0.0)                                  # (D, t_hw) f32

    # spatial attention: (Conv1x1 ∘ BN folded) -> ReLU -> Conv1x1 -> Sigmoid
    a = jnp.dot(w3_ref[...], refined.astype(jnp.bfloat16),
                preferred_element_type=jnp.float32) + b3_ref[...]
    a = jnp.maximum(a, 0.0).astype(jnp.bfloat16)                   # (Dh_pad, t_hw)
    a = jnp.dot(w4_ref[...], a, preferred_element_type=jnp.float32) + b4_ref[...]
    attn = jax.nn.sigmoid(a)                                       # (D, t_hw) f32

    attended = refined * attn                                      # (D, t_hw) f32

    # Mask HW-padding columns (only emitted when HW is not a tile multiple) so
    # the fused GAP sum is exact; masked spatial columns are sliced off anyway.
    if hw_valid % t_hw != 0:
        col = jax.lax.broadcasted_iota(jnp.int32, attended.shape, 1)
        valid = hw_valid - i * t_hw
        attended = jnp.where(col < valid, attended, 0.0)

    spatial_ref[...] = attended.astype(spatial_ref.dtype)          # bf16 writeback
    acc_ref[...] += jnp.sum(attended, axis=1, keepdims=True)       # f32 GAP partial
    gap_ref[...] = acc_ref[...]


# --------------------------------- wrapper ----------------------------------

def feature_extractor(feats_nchw, folded_params, *, t_hw=256,
                      compute_dtype=jnp.bfloat16):
    """feats_nchw: (B, C_in, H, W) backbone features. Returns (spatial, global)."""
    B, C_in, H, W = feats_nchw.shape
    HW = H * W
    D = folded_params["w2"].shape[1]
    dh = folded_params["w3"].shape[1]
    dh_pad = pl.cdiv(dh, 128) * 128          # pad attention bottleneck to full lanes

    # NCHW consumed natively: merge H,W (contiguous, no relayout), cast operands.
    x = feats_nchw.reshape(B, C_in, HW).astype(compute_dtype)

    t_hw = max(128, min(t_hw, pl.cdiv(HW, 128) * 128))
    hw_padded = pl.cdiv(HW, t_hw) * t_hw
    if hw_padded != HW:
        x = jnp.pad(x, ((0, 0), (0, 0), (0, hw_padded - HW)))

    # Host-side: transpose weights to channel-major orientation, fold in bf16,
    # zero-pad the Dh bottleneck; biases stay f32 as (C, 1) lane-broadcast columns.
    # TODO(synk): int8 (v5e/v6e) / fp8 (v7x) operands for the dominant w1 matmul
    # are an optional accuracy-permitting further step, not taken here.
    w1 = folded_params["w1"].T.astype(compute_dtype)               # (C_mid, C_in)
    w2 = folded_params["w2"].T.astype(compute_dtype)               # (D, C_mid)
    w3 = jnp.zeros((dh_pad, D), compute_dtype).at[:dh, :].set(
        folded_params["w3"].T.astype(compute_dtype))               # (Dh_pad, D)
    w4 = jnp.zeros((D, dh_pad), compute_dtype).at[:, :dh].set(
        folded_params["w4"].T.astype(compute_dtype))               # (D, Dh_pad)
    b1 = folded_params["b1"].reshape(-1, 1).astype(jnp.float32)
    b2 = folded_params["b2"].reshape(-1, 1).astype(jnp.float32)
    b3 = jnp.zeros((dh_pad, 1), jnp.float32).at[:dh, :].set(
        folded_params["b3"].reshape(-1, 1).astype(jnp.float32))
    b4 = folded_params["b4"].reshape(-1, 1).astype(jnp.float32)
    params = [w1, b1, w2, b2, w3, b3, w4, b4]

    num_tiles = hw_padded // t_hw
    grid = (B, num_tiles)

    kernel = functools.partial(_feature_kernel, hw_valid=HW, t_hw=t_hw)

    grid_spec = pltpu.PrefetchScalarGridSpec(
        num_scalar_prefetch=0,
        grid=grid,
        in_specs=[pl.BlockSpec((None, C_in, t_hw), lambda b, i: (b, 0, i))]
                 # constant block index -> each param is DMA'd once and stays
                 # resident in VMEM for the whole grid.
                 + [pl.BlockSpec(p.shape, lambda b, i: (0, 0)) for p in params],
        out_specs=(
            pl.BlockSpec((None, D, t_hw), lambda b, i: (b, 0, i)),   # spatial bf16
            pl.BlockSpec((None, D, 1), lambda b, i: (b, 0, 0)),      # fused GAP f32
        ),
        scratch_shapes=[pltpu.VMEM((D, 1), jnp.float32)],            # GAP accumulator
    )

    spatial_cf, gap = pl.pallas_call(
        kernel,
        out_shape=(jax.ShapeDtypeStruct((B, D, hw_padded), compute_dtype),
                   jax.ShapeDtypeStruct((B, D, 1), jnp.float32)),
        grid_spec=grid_spec,
        compiler_params=pltpu.CompilerParams(
            dimension_semantics=("parallel", "arbitrary"),
            vmem_limit_bytes=48 * 1024 * 1024),   # safe on v7x's 64 MiB/TC
    )(x, *params)

    # Module returns spatial as 'b (h w) c': transpose the (4x smaller, bf16) output.
    spatial = jnp.transpose(spatial_cf[:, :, :HW], (0, 2, 1))
    # AdaptiveAvgPool2d((1,1)) + flatten == mean over HW; sums were done in-kernel.
    global_ = gap[:, :, 0] * jnp.float32(1.0 / HW)
    return spatial, global_


# ----------------------------- parameter prep ------------------------------

def _bn_fold(gamma, beta, mean, var, eps=1e-5):
    scale = gamma / jnp.sqrt(var + eps)
    shift = beta - mean * scale
    return scale.astype(jnp.float32), shift.astype(jnp.float32)


def _make_params(key, c_in, c_mid, d):
    """Raw params: conv weights (C_in, C_out) == torch (Cout,Cin,1,1)[:,:,0,0].T,
    conv biases, and BN eval-mode scale/shift for layers 1-3."""
    dh = d // 16
    ks = jax.random.split(key, 20)
    p = {}
    p["w1"] = jax.random.normal(ks[0], (c_in, c_mid), jnp.float32) * 0.05
    p["cb1"] = jax.random.normal(ks[1], (c_mid,), jnp.float32) * 0.05
    p["w2"] = jax.random.normal(ks[2], (c_mid, d), jnp.float32) * 0.05
    p["cb2"] = jax.random.normal(ks[3], (d,), jnp.float32) * 0.05
    p["w3"] = jax.random.normal(ks[4], (d, dh), jnp.float32) * 0.05
    p["cb3"] = jax.random.normal(ks[5], (dh,), jnp.float32) * 0.05
    p["w4"] = jax.random.normal(ks[6], (dh, d), jnp.float32) * 0.05
    p["cb4"] = jax.random.normal(ks[7], (d,), jnp.float32) * 0.05
    for tag, c, o in (("1", c_mid, 8), ("2", d, 12), ("3", dh, 16)):
        gamma = 1.0 + 0.1 * jax.random.normal(ks[o + 0], (c,), jnp.float32)
        beta = 0.1 * jax.random.normal(ks[o + 1], (c,), jnp.float32)
        mean = 0.1 * jax.random.normal(ks[o + 2], (c,), jnp.float32)
        var = jnp.abs(jax.random.normal(ks[o + 3], (c,), jnp.float32)) + 0.5
        p["s" + tag], p["t" + tag] = _bn_fold(gamma, beta, mean, var)
    return p


def _fold_params(raw):
    """Fold eval-mode BN into the preceding 1x1 conv: W' = W*s, b' = cb*s + t."""
    def fold(w, cb, s, t):
        return w * s[None, :], cb * s + t
    f = {}
    f["w1"], f["b1"] = fold(raw["w1"], raw["cb1"], raw["s1"], raw["t1"])
    f["w2"], f["b2"] = fold(raw["w2"], raw["cb2"], raw["s2"], raw["t2"])
    f["w3"], f["b3"] = fold(raw["w3"], raw["cb3"], raw["s3"], raw["t3"])
    f["w4"], f["b4"] = raw["w4"], raw["cb4"]        # no BN after w4
    return f


# ------------------------------- references --------------------------------

def _reference_f32(feats_nchw, p):
    """Unfolded BN-eval pipeline in plain f32 JAX (semantic reference)."""
    B, C_in, H, W = feats_nchw.shape
    x = jnp.transpose(feats_nchw, (0, 2, 3, 1)).reshape(B, H * W, C_in)
    h = jnp.maximum((x @ p["w1"] + p["cb1"]) * p["s1"] + p["t1"], 0.0)
    refined = jnp.maximum((h @ p["w2"] + p["cb2"]) * p["s2"] + p["t2"], 0.0)
    a = jnp.maximum((refined @ p["w3"] + p["cb3"]) * p["s3"] + p["t3"], 0.0)
    attn = jax.nn.sigmoid(a @ p["w4"] + p["cb4"])
    attended = refined * attn
    return attended, jnp.mean(attended, axis=1)


def _reference_folded_bf16(feats_nchw, fp):
    """Same folded bf16-operand / f32-accumulate pipeline in plain JAX."""
    B, C_in, H, W = feats_nchw.shape
    x = jnp.transpose(feats_nchw, (0, 2, 3, 1)).reshape(B, H * W, C_in)
    x = x.astype(jnp.bfloat16)

    def mm(a, w):
        return jnp.dot(a, w.astype(jnp.bfloat16),
                       preferred_element_type=jnp.float32)

    h = jnp.maximum(mm(x, fp["w1"]) + fp["b1"], 0.0).astype(jnp.bfloat16)
    refined = jnp.maximum(mm(h, fp["w2"]) + fp["b2"], 0.0)
    a = jnp.maximum(mm(refined.astype(jnp.bfloat16), fp["w3"]) + fp["b3"], 0.0)
    attn = jax.nn.sigmoid(mm(a.astype(jnp.bfloat16), fp["w4"]) + fp["b4"])
    attended = refined * attn
    return attended.astype(jnp.bfloat16), jnp.mean(attended, axis=1)


if __name__ == "__main__":
    key = jax.random.PRNGKey(0)
    k_feat, k_param = jax.random.split(key)

    # Small stand-in for ResNet50 output (B, 2048, H/32, W/32).
    B, C_in, H, W = 2, 128, 16, 16       # HW = 256
    C_mid, D = 64, 128                   # stand-ins for 1024 / output_dim=512

    feats = jax.random.normal(k_feat, (B, C_in, H, W), jnp.float32)
    raw = _make_params(k_param, C_in, C_mid, D)
    folded = _fold_params(raw)

    spatial, global_ = feature_extractor(feats, folded, t_hw=256)
    spatial = jax.block_until_ready(spatial)
    global_ = jax.block_until_ready(global_)

    assert spatial.shape == (B, H * W, D)
    assert global_.shape == (B, D)

    # Tight check vs the identical folded bf16 pipeline in plain JAX.
    ref_sp, ref_g = _reference_folded_bf16(feats, folded)
    np.testing.assert_allclose(np.asarray(spatial.astype(jnp.float32)),
                               np.asarray(ref_sp.astype(jnp.float32)),
                               rtol=2e-2, atol=2e-2)
    np.testing.assert_allclose(np.asarray(global_),
                               np.asarray(ref_g),
                               rtol=2e-2, atol=2e-2)

    # Semantic check vs the unfolded f32 BN-eval reference (bf16 tolerance).
    ref_sp32, ref_g32 = _reference_f32(feats, raw)
    np.testing.assert_allclose(np.asarray(spatial.astype(jnp.float32)),
                               np.asarray(ref_sp32),
                               rtol=5e-2, atol=5e-2)
    np.testing.assert_allclose(np.asarray(global_),
                               np.asarray(ref_g32),
                               rtol=5e-2, atol=5e-2)

    print("KERNEL_OK")
</pallas_src>

<mosaic_0001>
module attributes {stable_mosaic.version = 11 : i64} {
  func.func @_feature_kernel(%arg0: i32, %arg1: i32, %arg2: memref<1x128x256xbf16, #tpu.memory_space<vmem>>, %arg3: memref<64x128xbf16, #tpu.memory_space<vmem>>, %arg4: memref<64x1xf32, #tpu.memory_space<vmem>>, %arg5: memref<128x64xbf16, #tpu.memory_space<vmem>>, %arg6: memref<128x1xf32, #tpu.memory_space<vmem>>, %arg7: memref<128x128xbf16, #tpu.memory_space<vmem>>, %arg8: memref<128x1xf32, #tpu.memory_space<vmem>>, %arg9: memref<128x128xbf16, #tpu.memory_space<vmem>>, %arg10: memref<128x1xf32, #tpu.memory_space<vmem>>, %arg11: memref<1x128x256xbf16, #tpu.memory_space<vmem>>, %arg12: memref<1x128x1xf32, #tpu.memory_space<vmem>>, %arg13: memref<128x1xf32, #tpu.memory_space<vmem>>) attributes {dimension_semantics = [#tpu.dimension_semantics<parallel>, #tpu.dimension_semantics<arbitrary>], iteration_bounds = array<i64: 2, 1>, scalar_prefetch = 0 : i64, scratch_operands = 1 : i64, tpu.core_type = #tpu.core_type<tc>, window_params = [{transform_indices = @transform_0, window_bounds = array<i64: 1, 128, 256>}, {pipeline_mode = #tpu.pipeline_mode<synchronous>, transform_indices = @transform_1, window_bounds = array<i64: 64, 128>}, {pipeline_mode = #tpu.pipeline_mode<synchronous>, transform_indices = @transform_2, window_bounds = array<i64: 64, 1>}, {pipeline_mode = #tpu.pipeline_mode<synchronous>, transform_indices = @transform_3, window_bounds = array<i64: 128, 64>}, {pipeline_mode = #tpu.pipeline_mode<synchronous>, transform_indices = @transform_4, window_bounds = array<i64: 128, 1>}, {pipeline_mode = #tpu.pipeline_mode<synchronous>, transform_indices = @transform_5, window_bounds = array<i64: 128, 128>}, {pipeline_mode = #tpu.pipeline_mode<synchronous>, transform_indices = @transform_6, window_bounds = array<i64: 128, 1>}, {pipeline_mode = #tpu.pipeline_mode<synchronous>, transform_indices = @transform_7, window_bounds = array<i64: 128, 128>}, {pipeline_mode = #tpu.pipeline_mode<synchronous>, transform_indices = @transform_8, window_bounds = array<i64: 128, 1>}, {transform_indices = @transform_9, window_bounds = array<i64: 1, 128, 256>}, {transform_indices = @transform_10, window_bounds = array<i64: 1, 128, 1>}]} {
    %c0_i32 = arith.constant 0 : i32
    %0 = arith.cmpi eq, %arg1, %c0_i32 : i32
    %1 = arith.extui %0 : i1 to i32
    %c0_i32_0 = arith.constant 0 : i32
    %2 = arith.cmpi ne, %1, %c0_i32_0 : i32
    scf.if %2 {
      %cst_39 = arith.constant 0.000000e+00 : f32
      %53 = vector.broadcast %cst_39 : f32 to vector<128x1xf32>
      %c0_40 = arith.constant 0 : index
      %c0_41 = arith.constant 0 : index
      %54 = vector.load %arg13[%c0_40, %c0_41] : memref<128x1xf32, #tpu.memory_space<vmem>>, vector<128x1xf32>
      tpu.vector_store %arg13[%c0_40, %c0_41], %53 {strides = array<i32>} : memref<128x1xf32, #tpu.memory_space<vmem>>, vector<128x1xf32>,
    } else {
    }
    %c0 = arith.constant 0 : index
    %c0_1 = arith.constant 0 : index
    %c0_2 = arith.constant 0 : index
    %3 = vector.load %arg2[%c0, %c0_1, %c0_2] : memref<1x128x256xbf16, #tpu.memory_space<vmem>>, vector<1x128x256xbf16>
    %4 = vector.shape_cast %3 : vector<1x128x256xbf16> to vector<128x256xbf16>
    %c0_3 = arith.constant 0 : index
    %c0_4 = arith.constant 0 : index
    %5 = vector.load %arg3[%c0_3, %c0_4] : memref<64x128xbf16, #tpu.memory_space<vmem>>, vector<64x128xbf16>
    %cst = arith.constant dense<0.000000e+00> : vector<64x256xf32>
    %6 = tpu.matmul %5, %4, %cst {dimension_numbers = #tpu.dot_dimension_numbers<[1], [0], [0], [1], [0, 0, 1, 1], [], []>} : vector<64x128xbf16>, vector<128x256xbf16>, vector<64x256xf32> -> vector<64x256xf32>
    %c0_5 = arith.constant 0 : index
    %c0_6 = arith.constant 0 : index
    %7 = vector.load %arg4[%c0_5, %c0_6] : memref<64x1xf32, #tpu.memory_space<vmem>>, vector<64x1xf32>
    %8 = vector.broadcast %7 : vector<64x1xf32> to vector<64x256xf32>
    %9 = arith.addf %6, %8 : vector<64x256xf32>
    %cst_7 = arith.constant 0.000000e+00 : f32
    %10 = vector.broadcast %cst_7 : f32 to vector<64x256xf32>
    %11 = arith.maximumf %9, %10 : vector<64x256xf32>
    %12 = arith.truncf %11 : vector<64x256xf32> to vector<64x256xbf16>
    %c0_8 = arith.constant 0 : index
    %c0_9 = arith.constant 0 : index
    %13 = vector.load %arg5[%c0_8, %c0_9] : memref<128x64xbf16, #tpu.memory_space<vmem>>, vector<128x64xbf16>
    %cst_10 = arith.constant dense<0.000000e+00> : vector<128x256xf32>
    %14 = tpu.matmul %13, %12, %cst_10 {dimension_numbers = #tpu.dot_dimension_numbers<[1], [0], [0], [1], [0, 0, 1, 1], [], []>} : vector<128x64xbf16>, vector<64x256xbf16>, vector<128x256xf32> -> vector<128x256xf32>
    %c0_11 = arith.constant 0 : index
    %c0_12 = arith.constant 0 : index
    %15 = vector.load %arg6[%c0_11, %c0_12] : memref<128x1xf32, #tpu.memory_space<vmem>>, vector<128x1xf32>
    %16 = vector.broadcast %15 : vector<128x1xf32> to vector<128x256xf32>
    %17 = arith.addf %14, %16 : vector<128x256xf32>
    %cst_13 = arith.constant 0.000000e+00 : f32
    %18 = vector.broadcast %cst_13 : f32 to vector<128x256xf32>
    %19 = arith.maximumf %17, %18 : vector<128x256xf32>
    %c0_14 = arith.constant 0 : index
    %c0_15 = arith.constant 0 : index
    %20 = vector.load %arg7[%c0_14, %c0_15] : memref<128x128xbf16, #tpu.memory_space<vmem>>, vector<128x128xbf16>
    %21 = arith.truncf %19 : vector<128x256xf32> to vector<128x256xbf16>
    %cst_16 = arith.constant dense<0.000000e+00> : vector<128x256xf32>
    %22 = tpu.matmul %20, %21, %cst_16 {dimension_numbers = #tpu.dot_dimension_numbers<[1], [0], [0], [1], [0, 0, 1, 1], [], []>} : vector<128x128xbf16>, vector<128x256xbf16>, vector<128x256xf32> -> vector<128x256xf32>
    %c0_17 = arith.constant 0 : index
    %c0_18 = arith.constant 0 : index
    %23 = vector.load %arg8[%c0_17, %c0_18] : memref<128x1xf32, #tpu.memory_space<vmem>>, vector<128x1xf32>
    %24 = vector.broadcast %23 : vector<128x1xf32> to vector<128x256xf32>
    %25 = arith.addf %22, %24 : vector<128x256xf32>
    %cst_19 = arith.constant 0.000000e+00 : f32
    %26 = vector.broadcast %cst_19 : f32 to vector<128x256xf32>
    %27 = arith.maximumf %25, %26 : vector<128x256xf32>
    %28 = arith.truncf %27 : vector<128x256xf32> to vector<128x256xbf16>
    %c0_20 = arith.constant 0 : index
    %c0_21 = arith.constant 0 : index
    %29 = vector.load %arg9[%c0_20, %c0_21] : memref<128x128xbf16, #tpu.memory_space<vmem>>, vector<128x128xbf16>
    %cst_22 = arith.constant dense<0.000000e+00> : vector<128x256xf32>
    %30 = tpu.matmul %29, %28, %cst_22 {dimension_numbers = #tpu.dot_dimension_numbers<[1], [0], [0], [1], [0, 0, 1, 1], [], []>} : vector<128x128xbf16>, vector<128x256xbf16>, vector<128x256xf32> -> vector<128x256xf32>
    %c0_23 = arith.constant 0 : index
    %c0_24 = arith.constant 0 : index
    %31 = vector.load %arg10[%c0_23, %c0_24] : memref<128x1xf32, #tpu.memory_space<vmem>>, vector<128x1xf32>
    %32 = vector.broadcast %31 : vector<128x1xf32> to vector<128x256xf32>
    %33 = arith.addf %30, %32 : vector<128x256xf32>
    %34 = arith.negf %33 : vector<128x256xf32>
    %35 = math.exp %34 : vector<128x256xf32>
    %cst_25 = arith.constant 1.000000e+00 : f32
    %36 = vector.broadcast %cst_25 : f32 to vector<128x256xf32>
    %37 = arith.addf %36, %35 : vector<128x256xf32>
    %38 = arith.divf %36, %37 : vector<128x256xf32>
    %39 = arith.mulf %19, %38 : vector<128x256xf32>
    %40 = arith.truncf %39 : vector<128x256xf32> to vector<128x256xbf16>
    %c0_26 = arith.constant 0 : index
    %c0_27 = arith.constant 0 : index
    %c0_28 = arith.constant 0 : index
    %41 = vector.load %arg11[%c0_26, %c0_27, %c0_28] : memref<1x128x256xbf16, #tpu.memory_space<vmem>>, vector<1x128x256xbf16>
    %42 = vector.shape_cast %41 : vector<1x128x256xbf16> to vector<128x256xbf16>
    %43 = vector.shape_cast %40 : vector<128x256xbf16> to vector<1x128x256xbf16>
    tpu.vector_store %arg11[%c0_26, %c0_27, %c0_28], %43 {strides = array<i32>} : memref<1x128x256xbf16, #tpu.memory_space<vmem>>, vector<1x128x256xbf16>,
    %c0_29 = arith.constant 0 : index
    %c0_30 = arith.constant 0 : index
    %44 = vector.load %arg13[%c0_29, %c0_30] : memref<128x1xf32, #tpu.memory_space<vmem>>, vector<128x1xf32>
    %cst_31 = arith.constant dense<0.000000e+00> : vector<128xf32>
    %45 = vector.multi_reduction <add>, %39, %cst_31 [1] : vector<128x256xf32> to vector<128xf32>
    %46 = vector.shape_cast %45 : vector<128xf32> to vector<128x1xf32>
    %47 = arith.addf %44, %46 : vector<128x1xf32>
    %c0_32 = arith.constant 0 : index
    %c0_33 = arith.constant 0 : index
    %48 = vector.load %arg13[%c0_32, %c0_33] : memref<128x1xf32, #tpu.memory_space<vmem>>, vector<128x1xf32>
    tpu.vector_store %arg13[%c0_32, %c0_33], %47 {strides = array<i32>} : memref<128x1xf32, #tpu.memory_space<vmem>>, vector<128x1xf32>,
    %c0_34 = arith.constant 0 : index
    %c0_35 = arith.constant 0 : index
    %49 = vector.load %arg13[%c0_34, %c0_35] : memref<128x1xf32, #tpu.memory_space<vmem>>, vector<128x1xf32>
    %c0_36 = arith.constant 0 : index
    %c0_37 = arith.constant 0 : index
    %c0_38 = arith.constant 0 : index
    %50 = vector.load %arg12[%c0_36, %c0_37, %c0_38] : memref<1x128x1xf32, #tpu.memory_space<vmem>>, vector<1x128x1xf32>
    %51 = vector.shape_cast %50 : vector<1x128x1xf32> to vector<128x1xf32>
    %52 = vector.shape_cast %49 : vector<128x1xf32> to vector<1x128x1xf32>
    tpu.vector_store %arg12[%c0_36, %c0_37, %c0_38], %52 {strides = array<i32>} : memref<1x128x1xf32, #tpu.memory_space<vmem>>, vector<1x128x1xf32>,
    return
  }
  func.func @transform_0(%arg0: i32, %arg1: i32) -> (i32, i32, i32) {
    %c0_i32 = arith.constant 0 : i32
    %c0_i32_0 = arith.constant 0 : i32
    return %arg0, %c0_i32, %arg1 : i32, i32, i32
  }
  func.func @transform_1(%arg0: i32, %arg1: i32) -> (i32, i32) {
    %c0_i32 = arith.constant 0 : i32
    %c0_i32_0 = arith.constant 0 : i32
    %c0_i32_1 = arith.constant 0 : i32
    return %c0_i32, %c0_i32_0 : i32, i32
  }
  func.func @transform_2(%arg0: i32, %arg1: i32) -> (i32, i32) {
    %c0_i32 = arith.constant 0 : i32
    %c0_i32_0 = arith.constant 0 : i32
    %c0_i32_1 = arith.constant 0 : i32
    return %c0_i32, %c0_i32_0 : i32, i32
  }
  func.func @transform_3(%arg0: i32, %arg1: i32) -> (i32, i32) {
    %c0_i32 = arith.constant 0 : i32
    %c0_i32_0 = arith.constant 0 : i32
    %c0_i32_1 = arith.constant 0 : i32
    return %c0_i32, %c0_i32_0 : i32, i32
  }
  func.func @transform_4(%arg0: i32, %arg1: i32) -> (i32, i32) {
    %c0_i32 = arith.constant 0 : i32
    %c0_i32_0 = arith.constant 0 : i32
    %c0_i32_1 = arith.constant 0 : i32
    return %c0_i32, %c0_i32_0 : i32, i32
  }
  func.func @transform_5(%arg0: i32, %arg1: i32) -> (i32, i32) {
    %c0_i32 = arith.constant 0 : i32
    %c0_i32_0 = arith.constant 0 : i32
    %c0_i32_1 = arith.constant 0 : i32
    return %c0_i32, %c0_i32_0 : i32, i32
  }
  func.func @transform_6(%arg0: i32, %arg1: i32) -> (i32, i32) {
    %c0_i32 = arith.constant 0 : i32
    %c0_i32_0 = arith.constant 0 : i32
    %c0_i32_1 = arith.constant 0 : i32
    return %c0_i32, %c0_i32_0 : i32, i32
  }
  func.func @transform_7(%arg0: i32, %arg1: i32) -> (i32, i32) {
    %c0_i32 = arith.constant 0 : i32
    %c0_i32_0 = arith.constant 0 : i32
    %c0_i32_1 = arith.constant 0 : i32
    return %c0_i32, %c0_i32_0 : i32, i32
  }
  func.func @transform_8(%arg0: i32, %arg1: i32) -> (i32, i32) {
    %c0_i32 = arith.constant 0 : i32
    %c0_i32_0 = arith.constant 0 : i32
    %c0_i32_1 = arith.constant 0 : i32
    return %c0_i32, %c0_i32_0 : i32, i32
  }
  func.func @transform_9(%arg0: i32, %arg1: i32) -> (i32, i32, i32) {
    %c0_i32 = arith.constant 0 : i32
    %c0_i32_0 = arith.constant 0 : i32
    return %arg0, %c0_i32, %arg1 : i32, i32, i32
  }
  func.func @transform_10(%arg0: i32, %arg1: i32) -> (i32, i32, i32) {
    %c0_i32 = arith.constant 0 : i32
    %c0_i32_0 = arith.constant 0 : i32
    %c0_i32_1 = arith.constant 0 : i32
    return %arg0, %c0_i32, %c0_i32_0 : i32, i32, i32
  }
}

</mosaic_0001>

<llo_original>
// kernel: tpu_custom_call.1
$region0: #{tpu_custom_call.1}
  #allocation0 [shape = 'u32[]', space=smem, size = 0x4, offset = 0x4, fixed_abs, tag = 'smem constant byte address 0x4 - core index']
  #allocation1 [shape = 'u32[72,128]{1,0:T(1,128)}', space=vmem, size = 0x9000, scoped, tag = 'internal scratch']
  #allocation2 [shape = 'f32[128,1]{1,0:T(8,128)}', space=vmem, size = 0x10000, scoped, tag = 'scratch operand']
  %s0 = inlined_call_operand.vmem [shape: bf16[2,128,256], index: 0, kind: input, shape index: {}]
  %s1 = inlined_call_operand.vmem [shape: bf16[64,128], index: 1, kind: input, shape index: {}]
  %s2 = inlined_call_operand.vmem [shape: f32[64,1], index: 2, kind: input, shape index: {}]
  %s3 = inlined_call_operand.vmem [shape: bf16[128,64], index: 3, kind: input, shape index: {}]
  %s4 = inlined_call_operand.vmem [shape: f32[128,1], index: 4, kind: input, shape index: {}]
  %s5 = inlined_call_operand.vmem [shape: bf16[128,128], index: 5, kind: input, shape index: {}]
  %s6 = inlined_call_operand.vmem [shape: f32[128,1], index: 6, kind: input, shape index: {}]
  %s7 = inlined_call_operand.vmem [shape: bf16[128,128], index: 7, kind: input, shape index: {}]
  %s8 = inlined_call_operand.vmem [shape: f32[128,1], index: 8, kind: input, shape index: {}]
  %s9 = inlined_call_operand.hbm [shape: bf16[2,128,256], index: 9, kind: output, shape index: {0}]
  %s10 = inlined_call_operand.vmem [shape: f32[2,128,1], index: 10, kind: output, shape index: {1}]
  %11 = xla_tuple %s9, %s10
  %s12 = sld [smem:[#allocation0]]
  $region81: #{tpu_custom_call.1} parent=0
    _
  %s14 = ssub.s32 1, %s12
  %s15 = scalar_select 0, %s14, %s12
  $region1: #{tpu_custom_call.1} parent=0
    #allocation3 [shape = 'u8[131072]{0}', space=vmem, size = 0x20000, scoped, tag = 'output window, operand 0']
    #allocation4 [shape = 's32[2]{0}', space=sflag, size = 0x8, scoped, tag = 'scoped memory for tpu_custom_call.1']
    %16 = vsyncpa [#allocation4], 0
    %s17 = scalar_lea.sflag [#allocation4], 1
    %18 = vsyncpa %s17, 0
    loop: start=0, step=1, limit=4
    $region2: #{tpu_custom_call.1} parent=1 // loop_pre_header
      _
    $region3: #{tpu_custom_call.1} parent=1 // loop_header
      %s20 = sphi 0, %s24
      %p21 = scmp.ge.s32.totalorder %s20, 4
      %s27 = sphi 0, %s39
      %s28 = sphi 0, %s35
      %s29 = sphi 0, %s27
      %s30 = sphi 0, %s28
      %s31 = sphi 0, %s29
      %s32 = sphi 0, %s30
      %s44 = sphi 0, %s46
      %s47 = sphi 0, %s44
      %s48 = sphi 0, %s47
      %s64 = sphi 0, %s48
      %s68 = sphi 0, %s68
      %s70 = sphi 0, %s68
      %s71 = sphi 0, %s70
      %s85 = sphi 0, %s71
      %s89 = sphi 0, %s89
      %s91 = sphi 0, %s89
      %s92 = sphi 0, %s91
      %s106 = sphi 0, %s92
      %s110 = sphi 0, %s110
      %s112 = sphi 0, %s110
      %s113 = sphi 0, %s112
      %s127 = sphi 0, %s113
      %s131 = sphi 0, %s131
      %s133 = sphi 0, %s131
      %s134 = sphi 0, %s133
      %s148 = sphi 0, %s134
      %s152 = sphi 0, %s152
      %s154 = sphi 0, %s152
      %s155 = sphi 0, %s154
      %s169 = sphi 0, %s155
      %s173 = sphi 0, %s173
      %s175 = sphi 0, %s173
      %s176 = sphi 0, %s175
      %s190 = sphi 0, %s176
      %s194 = sphi 0, %s194
      %s196 = sphi 0, %s194
      %s197 = sphi 0, %s196
      %s211 = sphi 0, %s197
      %s215 = sphi 0, %s215
      %s217 = sphi 0, %s215
      %s218 = sphi 0, %s217
      %s232 = sphi 0, %s218
      %s240 = sphi 0, %s242
      %s243 = sphi 0, %s240
      %s244 = sphi 0, %s243
      %s260 = sphi 0, %s244
      %s266 = sphi 0, %s268
      %s269 = sphi 0, %s266
      %s270 = sphi 0, %s269
      %s286 = sphi 0, %s270
    $region4: #{tpu_custom_call.1} parent=1 // loop_header_branch
      %23 = sbr.rel (%p21) target = $region8
    $region5: #{tpu_custom_call.1} parent=1 // loop_body
      %s25 = ssub.s32 %s20, 1
      %s26 = ssub.s32 %s20, 2
      %s33 = sadd.s32 1, %s28
      %p34 = scmp.ge.s32.totalorder %s33, 1
      %s35 = scalar_select %p34, 0, %s33
      %s36 = sadd.s32 1, %s27
      %s37 = scalar_select %p34, %s36, %s27
      %p38 = scmp.ge.s32.totalorder %s37, 2
      %s39 = scalar_select %p38, 0, %s37
      %s40 = ssub.s32 %s27, %s39
      %s41 = ssub.s32 %s28, %s35
      %s42 = sor.u32 %s40, %s41
      %p43 = scmp.eq.s32.totalorder %s42, 0
      %s45 = sadd.s32 %s44, 1
      %s46 = scalar_select %p43, %s44, %s45
      %p49 = pneg %p43
      %p50 = scmp.eq.s32.totalorder %s20, 1
      %p51 = por %p49, %p50
      %p52 = scmp.ne.s32.totalorder %s44, %s47
      %p53 = scmp.eq.s32.totalorder %s20, 0
      %p54 = por %p52, %p53
      %p55 = scmp.ne.s32.totalorder %s44, %s47
      %p56 = scmp.eq.s32.totalorder %s25, 1
      %p57 = por %p55, %p56
      %p58 = scmp.ne.s32.totalorder %s47, %s48
      %p59 = scmp.eq.s32.totalorder %s25, 0
      %p60 = por %p58, %p59
      %p61 = scmp.ne.s32.totalorder %s47, %s48
      %p62 = scmp.eq.s32.totalorder %s26, 1
      %p63 = por %p61, %p62
      %p65 = scmp.ne.s32.totalorder %s48, %s64
      %p66 = scmp.eq.s32.totalorder %s26, 0
      %p67 = por %p65, %p66
      %s69 = sadd.s32 %s68, 1
      %p72 = scmp.eq.s32.totalorder %s20, 1
      %p73 = scmp.ne.s32.totalorder %s68, %s70
      %p74 = scmp.eq.s32.totalorder %s20, 0
      %p75 = por %p73, %p74
      %p76 = scmp.ne.s32.totalorder %s68, %s70
      %p77 = scmp.eq.s32.totalorder %s25, 1
      %p78 = por %p76, %p77
      %p79 = scmp.ne.s32.totalorder %s70, %s71
      %p80 = scmp.eq.s32.totalorder %s25, 0
      %p81 = por %p79, %p80
      %p82 = scmp.ne.s32.totalorder %s70, %s71
      %p83 = scmp.eq.s32.totalorder %s26, 1
      %p84 = por %p82, %p83
      %p86 = scmp.ne.s32.totalorder %s71, %s85
      %p87 = scmp.eq.s32.totalorder %s26, 0
      %p88 = por %p86, %p87
      %s90 = sadd.s32 %s89, 1
      %p93 = scmp.eq.s32.totalorder %s20, 1
      %p94 = scmp.ne.s32.totalorder %s89, %s91
      %p95 = scmp.eq.s32.totalorder %s20, 0
      %p96 = por %p94, %p95
      %p97 = scmp.ne.s32.totalorder %s89, %s91
      %p98 = scmp.eq.s32.totalorder %s25, 1
      %p99 = por %p97, %p98
      %p100 = scmp.ne.s32.totalorder %s91, %s92
      %p101 = scmp.eq.s32.totalorder %s25, 0
      %p102 = por %p100, %p101
      %p103 = scmp.ne.s32.totalorder %s91, %s92
      %p104 = scmp.eq.s32.totalorder %s26, 1
      %p105 = por %p103, %p104
      %p107 = scmp.ne.s32.totalorder %s92, %s106
      %p108 = scmp.eq.s32.totalorder %s26, 0
      %p109 = por %p107, %p108
      %s111 = sadd.s32 %s110, 1
      %p114 = scmp.eq.s32.totalorder %s20, 1
      %p115 = scmp.ne.s32.totalorder %s110, %s112
      %p116 = scmp.eq.s32.totalorder %s20, 0
      %p117 = por %p115, %p116
      %p118 = scmp.ne.s32.totalorder %s110, %s112
      %p119 = scmp.eq.s32.totalorder %s25, 1
      %p120 = por %p118, %p119
      %p121 = scmp.ne.s32.totalorder %s112, %s113
      %p122 = scmp.eq.s32.totalorder %s25, 0
      %p123 = por %p121, %p122
      %p124 = scmp.ne.s32.totalorder %s112, %s113
      %p125 = scmp.eq.s32.totalorder %s26, 1
      %p126 = por %p124, %p125
      %p128 = scmp.ne.s32.totalorder %s113, %s127
      %p129 = scmp.eq.s32.totalorder %s26, 0
      %p130 = por %p128, %p129
      %s132 = sadd.s32 %s131, 1
      %p135 = scmp.eq.s32.totalorder %s20, 1
      %p136 = scmp.ne.s32.totalorder %s131, %s133
      %p137 = scmp.eq.s32.totalorder %s20, 0
      %p138 = por %p136, %p137
      %p139 = scmp.ne.s32.totalorder %s131, %s133
      %p140 = scmp.eq.s32.totalorder %s25, 1
      %p141 = por %p139, %p140
      %p142 = scmp.ne.s32.totalorder %s133, %s134
      %p143 = scmp.eq.s32.totalorder %s25, 0
      %p144 = por %p142, %p143
      %p145 = scmp.ne.s32.totalorder %s133, %s134
      %p146 = scmp.eq.s32.totalorder %s26, 1
      %p147 = por %p145, %p146
      %p149 = scmp.ne.s32.totalorder %s134, %s148
      %p150 = scmp.eq.s32.totalorder %s26, 0
      %p151 = por %p149, %p150
      %s153 = sadd.s32 %s152, 1
      %p156 = scmp.eq.s32.totalorder %s20, 1
      %p157 = scmp.ne.s32.totalorder %s152, %s154
      %p158 = scmp.eq.s32.totalorder %s20, 0
      %p159 = por %p157, %p158
      %p160 = scmp.ne.s32.totalorder %s152, %s154
      %p161 = scmp.eq.s32.totalorder %s25, 1
      %p162 = por %p160, %p161
      %p163 = scmp.ne.s32.totalorder %s154, %s155
      %p164 = scmp.eq.s32.totalorder %s25, 0
      %p165 = por %p163, %p164
      %p166 = scmp.ne.s32.totalorder %s154, %s155
      %p167 = scmp.eq.s32.totalorder %s26, 1
      %p168 = por %p166, %p167
      %p170 = scmp.ne.s32.totalorder %s155, %s169
      %p171 = scmp.eq.s32.totalorder %s26, 0
      %p172 = por %p170, %p171
      %s174 = sadd.s32 %s173, 1
      %p177 = scmp.eq.s32.totalorder %s20, 1
      %p178 = scmp.ne.s32.totalorder %s173, %s175
      %p179 = scmp.eq.s32.totalorder %s20, 0
      %p180 = por %p178, %p179
      %p181 = scmp.ne.s32.totalorder %s173, %s175
      %p182 = scmp.eq.s32.totalorder %s25, 1
      %p183 = por %p181, %p182
      %p184 = scmp.ne.s32.totalorder %s175, %s176
      %p185 = scmp.eq.s32.totalorder %s25, 0
      %p186 = por %p184, %p185
      %p187 = scmp.ne.s32.totalorder %s175, %s176
      %p188 = scmp.eq.s32.totalorder %s26, 1
      %p189 = por %p187, %p188
      %p191 = scmp.ne.s32.totalorder %s176, %s190
      %p192 = scmp.eq.s32.totalorder %s26, 0
      %p193 = por %p191, %p192
      %s195 = sadd.s32 %s194, 1
      %p198 = scmp.eq.s32.totalorder %s20, 1
      %p199 = scmp.ne.s32.totalorder %s194, %s196
      %p200 = scmp.eq.s32.totalorder %s20, 0
      %p201 = por %p199, %p200
      %p202 = scmp.ne.s32.totalorder %s194, %s196
      %p203 = scmp.eq.s32.totalorder %s25, 1
      %p204 = por %p202, %p203
      %p205 = scmp.ne.s32.totalorder %s196, %s197
      %p206 = scmp.eq.s32.totalorder %s25, 0
      %p207 = por %p205, %p206
      %p208 = scmp.ne.s32.totalorder %s196, %s197
      %p209 = scmp.eq.s32.totalorder %s26, 1
      %p210 = por %p208, %p209
      %p212 = scmp.ne.s32.totalorder %s197, %s211
      %p213 = scmp.eq.s32.totalorder %s26, 0
      %p214 = por %p212, %p213
      %s216 = sadd.s32 %s215, 1
      %p219 = scmp.eq.s32.totalorder %s20, 1
      %p220 = scmp.ne.s32.totalorder %s215, %s217
      %p221 = scmp.eq.s32.totalorder %s20, 0
      %p222 = por %p220, %p221
      %p223 = scmp.ne.s32.totalorder %s215, %s217
      %p224 = scmp.eq.s32.totalorder %s25, 1
      %p225 = por %p223, %p224
      %p226 = scmp.ne.s32.totalorder %s217, %s218
      %p227 = scmp.eq.s32.totalorder %s25, 0
      %p228 = por %p226, %p227
      %p229 = scmp.ne.s32.totalorder %s217, %s218
      %p230 = scmp.eq.s32.totalorder %s26, 1
      %p231 = por %p229, %p230
      %p233 = scmp.ne.s32.totalorder %s218, %s232
      %p234 = scmp.eq.s32.totalorder %s26, 0
      %p235 = por %p233, %p234
      %s236 = ssub.s32 %s27, %s39
      %s237 = ssub.s32 %s28, %s35
      %s238 = sor.u32 %s236, %s237
      %p239 = scmp.eq.s32.totalorder %s238, 0
      %s241 = sadd.s32 %s240, 1
      %s242 = scalar_select %p239, %s240, %s241
      %p245 = pneg %p239
      %p246 = scmp.eq.s32.totalorder %s20, 1
      %p247 = por %p245, %p246
      %p248 = scmp.ne.s32.totalorder %s240, %s243
      %p249 = scmp.eq.s32.totalorder %s20, 0
      %p250 = por %p248, %p249
      %p251 = scmp.ne.s32.totalorder %s240, %s243
      %p252 = scmp.eq.s32.totalorder %s25, 1
      %p253 = por %p251, %p252
      %p254 = scmp.ne.s32.totalorder %s243, %s244
      %p255 = scmp.eq.s32.totalorder %s25, 0
      %p256 = por %p254, %p255
      %p257 = scmp.ne.s32.totalorder %s243, %s244
      %p258 = scmp.eq.s32.totalorder %s26, 1
      %p259 = por %p257, %p258
      %p261 = scmp.ne.s32.totalorder %s244, %s260
      %p262 = scmp.eq.s32.totalorder %s26, 0
      %p263 = por %p261, %p262
      %s264 = ssub.s32 %s27, %s39
      %p265 = scmp.eq.s32.totalorder %s264, 0
      %s267 = sadd.s32 %s266, 1
      %s268 = scalar_select %p265, %s266, %s267
      %p271 = pneg %p265
      %p272 = scmp.eq.s32.totalorder %s20, 1
      %p273 = por %p271, %p272
      %p274 = scmp.ne.s32.totalorder %s266, %s269
      %p275 = scmp.eq.s32.totalorder %s20, 0
      %p276 = por %p274, %p275
      %p277 = scmp.ne.s32.totalorder %s266, %s269
      %p278 = scmp.eq.s32.totalorder %s25, 1
      %p279 = por %p277, %p278
      %p280 = scmp.ne.s32.totalorder %s269, %s270
      %p281 = scmp.eq.s32.totalorder %s25, 0
      %p282 = por %p280, %p281
      %p283 = scmp.ne.s32.totalorder %s269, %s270
      %p284 = scmp.eq.s32.totalorder %s26, 1
      %p285 = por %p283, %p284
      %p287 = scmp.ne.s32.totalorder %s270, %s286
      %p288 = scmp.eq.s32.totalorder %s26, 0
      %p289 = por %p287, %p288
      %p290 = scmp.le.s32.totalorder 1, %s20
      %p291 = scmp.lt.s32.totalorder %s20, 3
      %p292 = pnand %p290, %p291
      %p293 = pneg %p292
      // Predicated region
      $region9: #{tpu_custom_call.1} parent=5 // pred_check
        _
      $region10: #{tpu_custom_call.1} parent=5 // pred_check_branch
        %295 = sbr.rel (%p292) target = $region12
      $region11: #{tpu_custom_call.1} parent=5 // pred_region
        %s296 = ssub.s32 %s20, 1
        // Predicated region
        $region13: #{tpu_custom_call.1} parent=11 // pred_check
          %p297 = pneg %p81
        $region14: #{tpu_custom_call.1} parent=11 // pred_check_branch
          %299 = sbr.rel (%p297) target = $region16
        $region15: #{tpu_custom_call.1} parent=11 // pred_region
          _
        $region16: #{tpu_custom_call.1} parent=11 // pred_fallthru
          _
        // Predicated region
        $region17: #{tpu_custom_call.1} parent=11 // pred_check
          %p300 = pneg %p102
        $region18: #{tpu_custom_call.1} parent=11 // pred_check_branch
          %302 = sbr.rel (%p300) target = $region20
        $region19: #{tpu_custom_call.1} parent=11 // pred_region
          _
        $region20: #{tpu_custom_call.1} parent=11 // pred_fallthru
          _
        // Predicated region
        $region21: #{tpu_custom_call.1} parent=11 // pred_check
          %p303 = pneg %p123
        $region22: #{tpu_custom_call.1} parent=11 // pred_check_branch
          %305 = sbr.rel (%p303) target = $region24
        $region23: #{tpu_custom_call.1} parent=11 // pred_region
          _
        $region24: #{tpu_custom_call.1} parent=11 // pred_fallthru
          _
        // Predicated region
        $region25: #{tpu_custom_call.1} parent=11 // pred_check
          %p306 = pneg %p144
        $region26: #{tpu_custom_call.1} parent=11 // pred_check_branch
          %308 = sbr.rel (%p306) target = $region28
        $region27: #{tpu_custom_call.1} parent=11 // pred_region
          _
        $region28: #{tpu_custom_call.1} parent=11 // pred_fallthru
          _
        // Predicated region
        $region29: #{tpu_custom_call.1} parent=11 // pred_check
          %p309 = pneg %p165
        $region30: #{tpu_custom_call.1} parent=11 // pred_check_branch
          %311 = sbr.rel (%p309) target = $region32
        $region31: #{tpu_custom_call.1} parent=11 // pred_region
          _
        $region32: #{tpu_custom_call.1} parent=11 // pred_fallthru
          _
        // Predicated region
        $region33: #{tpu_custom_call.1} parent=11 // pred_check
          %p312 = pneg %p186
        $region34: #{tpu_custom_call.1} parent=11 // pred_check_branch
          %314 = sbr.rel (%p312) target = $region36
        $region35: #{tpu_custom_call.1} parent=11 // pred_region
          _
        $region36: #{tpu_custom_call.1} parent=11 // pred_fallthru
          _
        // Predicated region
        $region37: #{tpu_custom_call.1} parent=11 // pred_check
          %p315 = pneg %p207
        $region38: #{tpu_custom_call.1} parent=11 // pred_check_branch
          %317 = sbr.rel (%p315) target = $region40
        $region39: #{tpu_custom_call.1} parent=11 // pred_region
          _
        $region40: #{tpu_custom_call.1} parent=11 // pred_fallthru
          _
        // Predicated region
        $region41: #{tpu_custom_call.1} parent=11 // pred_check
          %p318 = pneg %p228
        $region42: #{tpu_custom_call.1} parent=11 // pred_check_branch
          %320 = sbr.rel (%p318) target = $region44
        $region43: #{tpu_custom_call.1} parent=11 // pred_region
          _
        $region44: #{tpu_custom_call.1} parent=11 // pred_fallthru
          _
      $region12: #{tpu_custom_call.1} parent=5 // pred_fallthru
        _
      %p321 = scmp.lt.s32.totalorder %s20, 2
      // Predicated region
      $region45: #{tpu_custom_call.1} parent=5 // pred_check
        %p322 = pneg %p321
      $region46: #{tpu_custom_call.1} parent=5 // pred_check_branch
        %324 = sbr.rel (%p322) target = $region48
      $region47: #{tpu_custom_call.1} parent=5 // pred_region
        // Predicated region
        $region49: #{tpu_custom_call.1} parent=47 // pred_check
          %p325 = pneg %p54
        $region50: #{tpu_custom_call.1} parent=47 // pred_check_branch
          %327 = sbr.rel (%p325) target = $region52
        $region51: #{tpu_custom_call.1} parent=47 // pred_region
          %s328 = smul.u32 2, %s28
          %p329 = scmp.lt.s32.totalorder %s27, 1
          %s330 = scalar_select %p329, %s27, 1
          %p331 = scmp.lt.s32.totalorder %s328, 1
          %s332 = scalar_select %p331, %s328, 1
          %s333 = smul.addr %s330, 32
          %s334 = sadd.s32 %s332, %s333
          %s335 = smul.addr %s334, 4
          %s336 = scalar_lea.vmem %s0, %s335
          %s337 = smul.u32 2, %s28
        $region52: #{tpu_custom_call.1} parent=47 // pred_fallthru
          _
      $region48: #{tpu_custom_call.1} parent=5 // pred_fallthru
        _
      %p338 = scmp.le.s32.totalorder 1, %s20
      %p339 = scmp.lt.s32.totalorder %s20, 3
      %p340 = pnand %p338, %p339
      %p341 = pneg %p340
      // Predicated region
      $region53: #{tpu_custom_call.1} parent=5 // pred_check
        _
      $region54: #{tpu_custom_call.1} parent=5 // pred_check_branch
        %343 = sbr.rel (%p340) target = $region56
      $region55: #{tpu_custom_call.1} parent=5 // pred_region
        %s344 = ssub.s32 %s20, 1
        %s345 = smul.u32 2, %s30
        %p346 = scmp.lt.s32.totalorder %s29, 1
        %s347 = scalar_select %p346, %s29, 1
        %p348 = scmp.lt.s32.totalorder %s345, 1
        %s349 = scalar_select %p348, %s345, 1
        %s350 = smul.addr %s347, 32
        %s351 = sadd.s32 %s349, %s350
        %s352 = smul.addr %s351, 4
        %s353 = scalar_lea.vmem %s0, %s352
        %p354 = pneg %p60
        %p355 = pneg %p57
        %p356 = pneg %p81
        %p357 = pneg %p78
        %p358 = pneg %p102
        %p359 = pneg %p99
        %p360 = pneg %p123
        %p361 = pneg %p120
        %p362 = pneg %p144
        %p363 = pneg %p141
        %p364 = pneg %p165
        %p365 = pneg %p162
        %p366 = pneg %p186
        %p367 = pneg %p183
        %p368 = pneg %p207
        %p369 = pneg %p204
        %p370 = pneg %p228
        %p371 = pneg %p225
        %p372 = pneg %p256
        %p373 = pneg %p253
        %s374 = sand.u32 %s243, 1
        %s375 = scalar_lea.sflag [#allocation4], %s374
        %s376 = sand.u32 %s243, 1
        %s377 = smul.addr %s376, 128
        %s378 = scalar_lea.vmem [#allocation3], %s377
        %p379 = pneg %p282
        %p380 = pneg %p279
        %p381 = scmp.lt.s32.totalorder %s29, 1
        %s382 = scalar_select %p381, %s29, 1
        %s383 = smul.addr %s382, 16
        %s384 = smul.addr %s383, 8
        %s385 = scalar_lea.vmem %s10, %s384
        %s386 = smul.u32 2, %s30
        %p387 = scmp.lt.s32.totalorder %s29, 1
        %s388 = scalar_select %p387, %s29, 1
        %p389 = scmp.lt.s32.totalorder %s386, 1
        %s390 = scalar_select %p389, %s386, 1
        %s391 = smul.addr %s388, 32
        %s392 = sadd.s32 %s390, %s391
        %s393 = smul.addr %s392, 4
        %s394 = scalar_lea.vmem %s0, %s393
        %s395 = smul.u32 2, %s30
        %s396 = smul.u32 2, %s30
        %p397 = scmp.lt.s32.totalorder %s29, 1
        %s398 = scalar_select %p397, %s29, 1
        %s399 = smul.addr %s398, 16
        %s400 = smul.addr %s399, 8
        %s401 = scalar_lea.vmem %s10, %s400
        %p403 = scmp.eq.s32.totalorder %s30, 0
        // Predicated region
        $region57: #{tpu_custom_call.1} parent=55 // pred_check
          %p404 = pneg %p403
        $region58: #{tpu_custom_call.1} parent=55 // pred_check_branch
          %406 = sbr.rel (%p404) target = $region60
        $region59: #{tpu_custom_call.1} parent=55 // pred_region
          %vm407 = vcmask 7168
          %408 = vst.msk [vmem:[#allocation2] sm:$0xff] %vm407, 0.0
          %409 = vst.msk [vmem:[#allocation2 + $0x8] sm:$0xff] %vm407, 0.0
          %410 = vst.msk [vmem:[#allocation2 + $0x10] sm:$0xff] %vm407, 0.0
          %411 = vst.msk [vmem:[#allocation2 + $0x18] sm:$0xff] %vm407, 0.0
          %412 = vst.msk [vmem:[#allocation2 + $0x20] sm:$0xff] %vm407, 0.0
          %413 = vst.msk [vmem:[#allocation2 + $0x28] sm:$0xff] %vm407, 0.0
          %414 = vst.msk [vmem:[#allocation2 + $0x30] sm:$0xff] %vm407, 0.0
          %415 = vst.msk [vmem:[#allocation2 + $0x38] sm:$0xff] %vm407, 0.0
          %416 = vst.msk [vmem:[#allocation2 + $0x40] sm:$0xff] %vm407, 0.0
          %417 = vst.msk [vmem:[#allocation2 + $0x48] sm:$0xff] %vm407, 0.0
          %418 = vst.msk [vmem:[#allocation2 + $0x50] sm:$0xff] %vm407, 0.0
          %419 = vst.msk [vmem:[#allocation2 + $0x58] sm:$0xff] %vm407, 0.0
          %420 = vst.msk [vmem:[#allocation2 + $0x60] sm:$0xff] %vm407, 0.0
          %421 = vst.msk [vmem:[#allocation2 + $0x68] sm:$0xff] %vm407, 0.0
          %422 = vst.msk [vmem:[#allocation2 + $0x70] sm:$0xff] %vm407, 0.0
          %423 = vst.msk [vmem:[#allocation2 + $0x78] sm:$0xff] %vm407, 0.0
        $region60: #{tpu_custom_call.1} parent=55 // pred_fallthru
          _
        %v424 = vld [vmem:[%s394] sm:$0xff]
        %v425 = vld [vmem:[%s394 + $0x8] sm:$0xff]
        %v426 = vld [vmem:[%s394 + $0x10] sm:$0xff]
        %v427 = vld [vmem:[%s394 + $0x18] sm:$0xff]
        %v428 = vld [vmem:[%s394 + $0x20] sm:$0xff]
        %v429 = vld [vmem:[%s394 + $0x28] sm:$0xff]
        %v430 = vld [vmem:[%s394 + $0x30] sm:$0xff]
        %v431 = vld [vmem:[%s394 + $0x38] sm:$0xff]
        %v432 = vld [vmem:[%s394 + $0x40] sm:$0xff]
        %v433 = vld [vmem:[%s394 + $0x48] sm:$0xff]
        %v434 = vld [vmem:[%s394 + $0x50] sm:$0xff]
        %v435 = vld [vmem:[%s394 + $0x58] sm:$0xff]
        %v436 = vld [vmem:[%s394 + $0x60] sm:$0xff]
        %v437 = vld [vmem:[%s394 + $0x68] sm:$0xff]
        %v438 = vld [vmem:[%s394 + $0x70] sm:$0xff]
        %v439 = vld [vmem:[%s394 + $0x78] sm:$0xff]
        %v440 = vld [vmem:[%s1] sm:$0xf]
        %v441 = vld [vmem:[%s1 + $0x4] sm:$0xf]
        %v442 = vld [vmem:[%s1 + $0x8] sm:$0xf]
        %v443 = vld [vmem:[%s1 + $0xc] sm:$0xf]
        %v444 = vld [vmem:[%s1 + $0x10] sm:$0xf]
        %v445 = vld [vmem:[%s1 + $0x14] sm:$0xf]
        %v446 = vld [vmem:[%s1 + $0x18] sm:$0xf]
        %v447 = vld [vmem:[%s1 + $0x1c] sm:$0xf]
        %v448 = vld [vmem:[%s2] sm:$0xff]
        %v449 = vld [vmem:[%s2 + $0x8] sm:$0xff]
        %v450 = vld [vmem:[%s2 + $0x10] sm:$0xff]
        %v451 = vld [vmem:[%s2 + $0x18] sm:$0xff]
        %v452 = vld [vmem:[%s2 + $0x20] sm:$0xff]
        %v453 = vld [vmem:[%s2 + $0x28] sm:$0xff]
        %v454 = vld [vmem:[%s2 + $0x30] sm:$0xff]
        %v455 = vld [vmem:[%s2 + $0x38] sm:$0xff]
        %457 = vset.pattern.permute.xlu0 0
        %458 = vperm.xlu0 %457, %v448
        %v459 = vpop.permute.xlu0 %458
        %462 = vset.pattern.permute.xlu0 0
        %463 = vperm.xlu0 %462, %v449
        %v464 = vpop.permute.xlu0 %463
        %467 = vset.pattern.permute.xlu0 0
        %468 = vperm.xlu0 %467, %v450
        %v469 = vpop.permute.xlu0 %468
        %472 = vset.pattern.permute.xlu0 0
        %473 = vperm.xlu0 %472, %v451
        %v474 = vpop.permute.xlu0 %473
        %477 = vset.pattern.permute.xlu0 0
        %478 = vperm.xlu0 %477, %v452
        %v479 = vpop.permute.xlu0 %478
        %482 = vset.pattern.permute.xlu0 0
        %483 = vperm.xlu0 %482, %v453
        %v484 = vpop.permute.xlu0 %483
        %487 = vset.pattern.permute.xlu0 0
        %488 = vperm.xlu0 %487, %v454
        %v489 = vpop.permute.xlu0 %488
        %492 = vset.pattern.permute.xlu0 0
        %493 = vperm.xlu0 %492, %v455
        %v494 = vpop.permute.xlu0 %493
        %v504 = vunpack.c.l.b16 %v440
        %v505 = vunpack.c.l.b16 %v441
        %v506 = vunpack.c.l.b16 %v442
        %v507 = vunpack.c.l.b16 %v443
        %v508 = vunpack.c.l.b16 %v444
        %v509 = vunpack.c.l.b16 %v445
        %v510 = vunpack.c.l.b16 %v446
        %v511 = vunpack.c.l.b16 %v447
        %v512 = vpack.c.b16 %v505, %v504
        %v513 = vpack.c.b16 %v507, %v506
        %v514 = vpack.c.b16 %v509, %v508
        %v515 = vpack.c.b16 %v511, %v510
        %v536 = vunpack.c.l.b16 %v424
        %v537 = vunpack.c.h.b16 %v424
        %v538 = vunpack.c.l.b16 %v425
        %v539 = vunpack.c.h.b16 %v425
        %v540 = vunpack.c.l.b16 %v426
        %v541 = vunpack.c.h.b16 %v426
        %v542 = vunpack.c.l.b16 %v427
        %v543 = vunpack.c.h.b16 %v427
        %v544 = vunpack.c.l.b16 %v428
        %v545 = vunpack.c.h.b16 %v428
        %v546 = vunpack.c.l.b16 %v429
        %v547 = vunpack.c.h.b16 %v429
        %v548 = vunpack.c.l.b16 %v430
        %v549 = vunpack.c.h.b16 %v430
        %v550 = vunpack.c.l.b16 %v431
        %v551 = vunpack.c.h.b16 %v431
        %v552 = vunpack.c.l.b16 %v432
        %v553 = vunpack.c.h.b16 %v432
        %v554 = vunpack.c.l.b16 %v433
        %v555 = vunpack.c.h.b16 %v433
        %v556 = vunpack.c.l.b16 %v434
        %v557 = vunpack.c.h.b16 %v434
        %v558 = vunpack.c.l.b16 %v435
        %v559 = vunpack.c.h.b16 %v435
        %v560 = vunpack.c.l.b16 %v436
        %v561 = vunpack.c.h.b16 %v436
        %v562 = vunpack.c.l.b16 %v437
        %v563 = vunpack.c.h.b16 %v437
        %v564 = vunpack.c.l.b16 %v438
        %v565 = vunpack.c.h.b16 %v438
        %v566 = vunpack.c.l.b16 %v439
        %v567 = vunpack.c.h.b16 %v439
        %v568 = vpack.c.b16 %v538, %v536
        %v569 = vpack.c.b16 %v539, %v537
        %v570 = vpack.c.b16 %v542, %v540
        %v571 = vpack.c.b16 %v543, %v541
        %v572 = vpack.c.b16 %v546, %v544
        %v573 = vpack.c.b16 %v547, %v545
        %v574 = vpack.c.b16 %v550, %v548
        %v575 = vpack.c.b16 %v551, %v549
        %v576 = vpack.c.b16 %v554, %v552
        %v577 = vpack.c.b16 %v555, %v553
        %v578 = vpack.c.b16 %v558, %v556
        %v579 = vpack.c.b16 %v559, %v557
        %v580 = vpack.c.b16 %v562, %v560
        %v581 = vpack.c.b16 %v563, %v561
        %v582 = vpack.c.b16 %v566, %v564
        %v583 = vpack.c.b16 %v567, %v565
        %600 = vmatpush.bf16.msra.mxu0 %v582
        %601 = vmatpush.bf16.msra.mxu0 %v580
        %602 = vmatpush.bf16.msra.mxu0 %v578
        %603 = vmatpush.bf16.msra.mxu0 %v576
        %604 = vmatpush.bf16.msra.mxu0 %v574
        %605 = vmatpush.bf16.msra.mxu0 %v572
        %606 = vmatpush.bf16.msra.mxu0 %v570
        %607 = vmatpush.bf16.msra.mxu0 %v568
        %608 = vmatmul.bf16.gmra.mxu0 %v512
        %v609 = vpop.f32.mrf.mxu0
        %v610 = vadd.f32 %v459, %v609
        %v611 = vpop.f32.mrf.mxu0
        %v612 = vadd.f32 %v464, %v611
        %613 = vmatmul.bf16.gmra.mxu0 %v513
        %v614 = vpop.f32.mrf.mxu0
        %v615 = vadd.f32 %v469, %v614
        %v616 = vpop.f32.mrf.mxu0
        %v617 = vadd.f32 %v474, %v616
        %618 = vmatmul.bf16.gmra.mxu0 %v514
        %v619 = vpop.f32.mrf.mxu0
        %v620 = vadd.f32 %v479, %v619
        %v621 = vpop.f32.mrf.mxu0
        %v622 = vadd.f32 %v484, %v621
        %623 = vmatmul.bf16.gmra.mxu0 %v515
        %v624 = vpop.f32.mrf.mxu0
        %v625 = vadd.f32 %v489, %v624
        %v626 = vpop.f32.mrf.mxu0
        %v627 = vadd.f32 %v494, %v626
        %628 = vdwg.mxu0
        %629 = vmatpush.bf16.msra.mxu0 %v583
        %630 = vmatpush.bf16.msra.mxu0 %v581
        %631 = vmatpush.bf16.msra.mxu0 %v579
        %632 = vmatpush.bf16.msra.mxu0 %v577
        %633 = vmatpush.bf16.msra.mxu0 %v575
        %634 = vmatpush.bf16.msra.mxu0 %v573
        %635 = vmatpush.bf16.msra.mxu0 %v571
        %636 = vmatpush.bf16.msra.mxu0 %v569
        %637 = vmatmul.bf16.gmra.mxu0 %v512
        %v638 = vpop.f32.mrf.mxu0
        %v639 = vadd.f32 %v459, %v638
        %v640 = vpop.f32.mrf.mxu0
        %v641 = vadd.f32 %v464, %v640
        %642 = vmatmul.bf16.gmra.mxu0 %v513
        %v643 = vpop.f32.mrf.mxu0
        %v644 = vadd.f32 %v469, %v643
        %v645 = vpop.f32.mrf.mxu0
        %v646 = vadd.f32 %v474, %v645
        %647 = vmatmul.bf16.gmra.mxu0 %v514
        %v648 = vpop.f32.mrf.mxu0
        %v649 = vadd.f32 %v479, %v648
        %v650 = vpop.f32.mrf.mxu0
        %v651 = vadd.f32 %v484, %v650
        %652 = vmatmul.bf16.gmra.mxu0 %v515
        %v653 = vpop.f32.mrf.mxu0
        %v654 = vadd.f32 %v489, %v653
        %v655 = vpop.f32.mrf.mxu0
        %v656 = vadd.f32 %v494, %v655
        %657 = vdwg.mxu0
        %v658 = vmax.f32 %v610, 0.0
        %v659 = vmax.f32 %v639, 0.0
        %v660 = vmax.f32 %v612, 0.0
        %v661 = vmax.f32 %v641, 0.0
        %v662 = vmax.f32 %v615, 0.0
        %v663 = vmax.f32 %v644, 0.0
        %v664 = vmax.f32 %v617, 0.0
        %v665 = vmax.f32 %v646, 0.0
        %v666 = vmax.f32 %v620, 0.0
        %v667 = vmax.f32 %v649, 0.0
        %v668 = vmax.f32 %v622, 0.0
        %v669 = vmax.f32 %v651, 0.0
        %v670 = vmax.f32 %v625, 0.0
        %v671 = vmax.f32 %v654, 0.0
        %v672 = vmax.f32 %v627, 0.0
        %v673 = vmax.f32 %v656, 0.0
        %v674 = vpack.c.bf16 %v660, %v658
        %v675 = vpack.c.bf16 %v661, %v659
        %v676 = vpack.c.bf16 %v664, %v662
        %v677 = vpack.c.bf16 %v665, %v663
        %v678 = vpack.c.bf16 %v668, %v666
        %v679 = vpack.c.bf16 %v669, %v667
        %v680 = vpack.c.bf16 %v672, %v670
        %v681 = vpack.c.bf16 %v673, %v671
        %v682 = vld [vmem:[%s3] sm:$0xf]
        %v683 = vld [vmem:[%s3 + $0x4] sm:$0xf]
        %v684 = vld [vmem:[%s3 + $0x8] sm:$0xf]
        %v685 = vld [vmem:[%s3 + $0xc] sm:$0xf]
        %v686 = vld [vmem:[%s3 + $0x10] sm:$0xf]
        %v687 = vld [vmem:[%s3 + $0x14] sm:$0xf]
        %v688 = vld [vmem:[%s3 + $0x18] sm:$0xf]
        %v689 = vld [vmem:[%s3 + $0x1c] sm:$0xf]
        %v690 = vld [vmem:[%s3 + $0x20] sm:$0xf]
        %v691 = vld [vmem:[%s3 + $0x24] sm:$0xf]
        %v692 = vld [vmem:[%s3 + $0x28] sm:$0xf]
        %v693 = vld [vmem:[%s3 + $0x2c] sm:$0xf]
        %v694 = vld [vmem:[%s3 + $0x30] sm:$0xf]
        %v695 = vld [vmem:[%s3 + $0x34] sm:$0xf]
        %v696 = vld [vmem:[%s3 + $0x38] sm:$0xf]
        %v697 = vld [vmem:[%s3 + $0x3c] sm:$0xf]
        %v698 = vld [vmem:[%s4] sm:$0xff]
        %v699 = vld [vmem:[%s4 + $0x8] sm:$0xff]
        %v700 = vld [vmem:[%s4 + $0x10] sm:$0xff]
        %v701 = vld [vmem:[%s4 + $0x18] sm:$0xff]
        %v702 = vld [vmem:[%s4 + $0x20] sm:$0xff]
        %v703 = vld [vmem:[%s4 + $0x28] sm:$0xff]
        %v704 = vld [vmem:[%s4 + $0x30] sm:$0xff]
        %v705 = vld [vmem:[%s4 + $0x38] sm:$0xff]
        %v706 = vld [vmem:[%s4 + $0x40] sm:$0xff]
        %v707 = vld [vmem:[%s4 + $0x48] sm:$0xff]
        %v708 = vld [vmem:[%s4 + $0x50] sm:$0xff]
        %v709 = vld [vmem:[%s4 + $0x58] sm:$0xff]
        %v710 = vld [vmem:[%s4 + $0x60] sm:$0xff]
        %v711 = vld [vmem:[%s4 + $0x68] sm:$0xff]
        %v712 = vld [vmem:[%s4 + $0x70] sm:$0xff]
        %v713 = vld [vmem:[%s4 + $0x78] sm:$0xff]
        %715 = vset.pattern.permute.xlu0 0
        %716 = vperm.xlu0 %715, %v698
        %v717 = vpop.permute.xlu0 %716
        %720 = vset.pattern.permute.xlu0 0
        %721 = vperm.xlu0 %720, %v699
        %v722 = vpop.permute.xlu0 %721
        %725 = vset.pattern.permute.xlu0 0
        %726 = vperm.xlu0 %725, %v700
        %v727 = vpop.permute.xlu0 %726
        %730 = vset.pattern.permute.xlu0 0
        %731 = vperm.xlu0 %730, %v701
        %v732 = vpop.permute.xlu0 %731
        %735 = vset.pattern.permute.xlu0 0
        %736 = vperm.xlu0 %735, %v702
        %v737 = vpop.permute.xlu0 %736
        %740 = vset.pattern.permute.xlu0 0
        %741 = vperm.xlu0 %740, %v703
        %v742 = vpop.permute.xlu0 %741
        %745 = vset.pattern.permute.xlu0 0
        %746 = vperm.xlu0 %745, %v704
        %v747 = vpop.permute.xlu0 %746
        %750 = vset.pattern.permute.xlu0 0
        %751 = vperm.xlu0 %750, %v705
        %v752 = vpop.permute.xlu0 %751
        %755 = vset.pattern.permute.xlu0 0
        %756 = vperm.xlu0 %755, %v706
        %v757 = vpop.permute.xlu0 %756
        %760 = vset.pattern.permute.xlu0 0
        %761 = vperm.xlu0 %760, %v707
        %v762 = vpop.permute.xlu0 %761
        %765 = vset.pattern.permute.xlu0 0
        %766 = vperm.xlu0 %765, %v708
        %v767 = vpop.permute.xlu0 %766
        %770 = vset.pattern.permute.xlu0 0
        %771 = vperm.xlu0 %770, %v709
        %v772 = vpop.permute.xlu0 %771
        %775 = vset.pattern.permute.xlu0 0
        %776 = vperm.xlu0 %775, %v710
        %v777 = vpop.permute.xlu0 %776
        %780 = vset.pattern.permute.xlu0 0
        %781 = vperm.xlu0 %780, %v711
        %v782 = vpop.permute.xlu0 %781
        %785 = vset.pattern.permute.xlu0 0
        %786 = vperm.xlu0 %785, %v712
        %v787 = vpop.permute.xlu0 %786
        %790 = vset.pattern.permute.xlu0 0
        %791 = vperm.xlu0 %790, %v713
        %v792 = vpop.permute.xlu0 %791
        %v810 = vunpack.c.l.b16 %v682
        %v811 = vunpack.c.l.b16 %v683
        %v812 = vunpack.c.l.b16 %v684
        %v813 = vunpack.c.l.b16 %v685
        %v814 = vunpack.c.l.b16 %v686
        %v815 = vunpack.c.l.b16 %v687
        %v816 = vunpack.c.l.b16 %v688
        %v817 = vunpack.c.l.b16 %v689
        %v818 = vunpack.c.l.b16 %v690
        %v819 = vunpack.c.l.b16 %v691
        %v820 = vunpack.c.l.b16 %v692
        %v821 = vunpack.c.l.b16 %v693
        %v822 = vunpack.c.l.b16 %v694
        %v823 = vunpack.c.l.b16 %v695
        %v824 = vunpack.c.l.b16 %v696
        %v825 = vunpack.c.l.b16 %v697
        %v826 = vpack.c.b16 %v811, %v810
        %v827 = vpack.c.b16 %v813, %v812
        %v828 = vpack.c.b16 %v815, %v814
        %v829 = vpack.c.b16 %v817, %v816
        %v830 = vpack.c.b16 %v819, %v818
        %v831 = vpack.c.b16 %v821, %v820
        %v832 = vpack.c.b16 %v823, %v822
        %v833 = vpack.c.b16 %v825, %v824
        %vm834 = vcmask 523264
        %v836 = vsel %vm834, %v826, 0
        %v839 = vsel %vm834, %v827, 0
        %v842 = vsel %vm834, %v828, 0
        %v845 = vsel %vm834, %v829, 0
        %v848 = vsel %vm834, %v830, 0
        %v851 = vsel %vm834, %v831, 0
        %v854 = vsel %vm834, %v832, 0
        %v857 = vsel %vm834, %v833, 0
        %859 = vmatpush.bf16.msra.mxu0 0
        %860 = vmatpush.bf16.msra.mxu0 0
        %861 = vmatpush.bf16.msra.mxu0 0
        %862 = vmatpush.bf16.msra.mxu0 0
        %863 = vmatpush.bf16.msra.mxu0 %v680
        %864 = vmatpush.bf16.msra.mxu0 %v678
        %865 = vmatpush.bf16.msra.mxu0 %v676
        %866 = vmatpush.bf16.msra.mxu0 %v674
        %867 = vmatmul.bf16.gmra.mxu0 %v836
        %v868 = vpop.f32.mrf.mxu0
        %v869 = vadd.f32 %v717, %v868
        %v870 = vpop.f32.mrf.mxu0
        %v871 = vadd.f32 %v722, %v870
        %872 = vmatmul.bf16.gmra.mxu0 %v839
        %v873 = vpop.f32.mrf.mxu0
        %v874 = vadd.f32 %v727, %v873
        %v875 = vpop.f32.mrf.mxu0
        %v876 = vadd.f32 %v732, %v875
        %877 = vmatmul.bf16.gmra.mxu0 %v842
        %v878 = vpop.f32.mrf.mxu0
        %v879 = vadd.f32 %v737, %v878
        %v880 = vpop.f32.mrf.mxu0
        %v881 = vadd.f32 %v742, %v880
        %882 = vmatmul.bf16.gmra.mxu0 %v845
        %v883 = vpop.f32.mrf.mxu0
        %v884 = vadd.f32 %v747, %v883
        %v885 = vpop.f32.mrf.mxu0
        %v886 = vadd.f32 %v752, %v885
        %887 = vmatmul.bf16.gmra.mxu0 %v848
        %v888 = vpop.f32.mrf.mxu0
        %v889 = vadd.f32 %v757, %v888
        %v890 = vpop.f32.mrf.mxu0
        %v891 = vadd.f32 %v762, %v890
        %892 = vmatmul.bf16.gmra.mxu0 %v851
        %v893 = vpop.f32.mrf.mxu0
        %v894 = vadd.f32 %v767, %v893
        %v895 = vpop.f32.mrf.mxu0
        %v896 = vadd.f32 %v772, %v895
        %897 = vmatmul.bf16.gmra.mxu0 %v854
        %v898 = vpop.f32.mrf.mxu0
        %v899 = vadd.f32 %v777, %v898
        %v900 = vpop.f32.mrf.mxu0
        %v901 = vadd.f32 %v782, %v900
        %902 = vmatmul.bf16.gmra.mxu0 %v857
        %v903 = vpop.f32.mrf.mxu0
        %v904 = vadd.f32 %v787, %v903
        %v905 = vpop.f32.mrf.mxu0
        %v906 = vadd.f32 %v792, %v905
        %907 = vdwg.mxu0
        %908 = vmatpush.bf16.msra.mxu0 0
        %909 = vmatpush.bf16.msra.mxu0 0
        %910 = vmatpush.bf16.msra.mxu0 0
        %911 = vmatpush.bf16.msra.mxu0 0
        %912 = vmatpush.bf16.msra.mxu0 %v681
        %913 = vmatpush.bf16.msra.mxu0 %v679
        %914 = vmatpush.bf16.msra.mxu0 %v677
        %915 = vmatpush.bf16.msra.mxu0 %v675
        %916 = vmatmul.bf16.gmra.mxu0 %v836
        %v917 = vpop.f32.mrf.mxu0
        %v918 = vadd.f32 %v717, %v917
        %v919 = vpop.f32.mrf.mxu0
        %v920 = vadd.f32 %v722, %v919
        %921 = vmatmul.bf16.gmra.mxu0 %v839
        %v922 = vpop.f32.mrf.mxu0
        %v923 = vadd.f32 %v727, %v922
        %v924 = vpop.f32.mrf.mxu0
        %v925 = vadd.f32 %v732, %v924
        %926 = vmatmul.bf16.gmra.mxu0 %v842
        %v927 = vpop.f32.mrf.mxu0
        %v928 = vadd.f32 %v737, %v927
        %v929 = vpop.f32.mrf.mxu0
        %v930 = vadd.f32 %v742, %v929
        %931 = vmatmul.bf16.gmra.mxu0 %v845
        %v932 = vpop.f32.mrf.mxu0
        %v933 = vadd.f32 %v747, %v932
        %v934 = vpop.f32.mrf.mxu0
        %v935 = vadd.f32 %v752, %v934
        %936 = vmatmul.bf16.gmra.mxu0 %v848
        %v937 = vpop.f32.mrf.mxu0
        %v938 = vadd.f32 %v757, %v937
        %v939 = vpop.f32.mrf.mxu0
        %v940 = vadd.f32 %v762, %v939
        %941 = vmatmul.bf16.gmra.mxu0 %v851
        %v942 = vpop.f32.mrf.mxu0
        %v943 = vadd.f32 %v767, %v942
        %v944 = vpop.f32.mrf.mxu0
        %v945 = vadd.f32 %v772, %v944
        %946 = vmatmul.bf16.gmra.mxu0 %v854
        %v947 = vpop.f32.mrf.mxu0
        %v948 = vadd.f32 %v777, %v947
        %v949 = vpop.f32.mrf.mxu0
        %v950 = vadd.f32 %v782, %v949
        %951 = vmatmul.bf16.gmra.mxu0 %v857
        %v952 = vpop.f32.mrf.mxu0
        %v953 = vadd.f32 %v787, %v952
        %v954 = vpop.f32.mrf.mxu0
        %v955 = vadd.f32 %v792, %v954
        %956 = vdwg.mxu0
        %v957 = vmax.f32 %v869, 0.0
        %v958 = vmax.f32 %v918, 0.0
        %v959 = vmax.f32 %v871, 0.0
        %v960 = vmax.f32 %v920, 0.0
        %v961 = vmax.f32 %v874, 0.0
        %v962 = vmax.f32 %v923, 0.0
        %v963 = vmax.f32 %v876, 0.0
        %v964 = vmax.f32 %v925, 0.0
        %v965 = vmax.f32 %v879, 0.0
        %v966 = vmax.f32 %v928, 0.0
        %v967 = vmax.f32 %v881, 0.0
        %v968 = vmax.f32 %v930, 0.0
        %v969 = vmax.f32 %v884, 0.0
        %v970 = vmax.f32 %v933, 0.0
        %v971 = vmax.f32 %v886, 0.0
        %v972 = vmax.f32 %v935, 0.0
        %v973 = vmax.f32 %v889, 0.0
        %v974 = vmax.f32 %v938, 0.0
        %v975 = vmax.f32 %v891, 0.0
        %v976 = vmax.f32 %v940, 0.0
        %v977 = vmax.f32 %v894, 0.0
        %v978 = vmax.f32 %v943, 0.0
        %v979 = vmax.f32 %v896, 0.0
        %v980 = vmax.f32 %v945, 0.0
        %v981 = vmax.f32 %v899, 0.0
        %v982 = vmax.f32 %v948, 0.0
        %v983 = vmax.f32 %v901, 0.0
        %v984 = vmax.f32 %v950, 0.0
        %v985 = vmax.f32 %v904, 0.0
        %v986 = vmax.f32 %v953, 0.0
        %v987 = vmax.f32 %v906, 0.0
        %v988 = vmax.f32 %v955, 0.0
        %v989 = vld [vmem:[%s5] sm:$0xf]
        %v990 = vld [vmem:[%s5 + $0x4] sm:$0xf]
        %v991 = vld [vmem:[%s5 + $0x8] sm:$0xf]
        %v992 = vld [vmem:[%s5 + $0xc] sm:$0xf]
        %v993 = vld [vmem:[%s5 + $0x10] sm:$0xf]
        %v994 = vld [vmem:[%s5 + $0x14] sm:$0xf]
        %v995 = vld [vmem:[%s5 + $0x18] sm:$0xf]
        %v996 = vld [vmem:[%s5 + $0x1c] sm:$0xf]
        %v997 = vld [vmem:[%s5 + $0x20] sm:$0xf]
        %v998 = vld [vmem:[%s5 + $0x24] sm:$0xf]
        %v999 = vld [vmem:[%s5 + $0x28] sm:$0xf]
        %v1000 = vld [vmem:[%s5 + $0x2c] sm:$0xf]
        %v1001 = vld [vmem:[%s5 + $0x30] sm:$0xf]
        %v1002 = vld [vmem:[%s5 + $0x34] sm:$0xf]
        %v1003 = vld [vmem:[%s5 + $0x38] sm:$0xf]
        %v1004 = vld [vmem:[%s5 + $0x3c] sm:$0xf]
        %v1005 = vpack.c.bf16 %v959, %v957
        %v1006 = vpack.c.bf16 %v960, %v958
        %v1007 = vpack.c.bf16 %v963, %v961
        %v1008 = vpack.c.bf16 %v964, %v962
        %v1009 = vpack.c.bf16 %v967, %v965
        %v1010 = vpack.c.bf16 %v968, %v966
        %v1011 = vpack.c.bf16 %v971, %v969
        %v1012 = vpack.c.bf16 %v972, %v970
        %v1013 = vpack.c.bf16 %v975, %v973
        %v1014 = vpack.c.bf16 %v976, %v974
        %v1015 = vpack.c.bf16 %v979, %v977
        %v1016 = vpack.c.bf16 %v980, %v978
        %v1017 = vpack.c.bf16 %v983, %v981
        %v1018 = vpack.c.bf16 %v984, %v982
        %v1019 = vpack.c.bf16 %v987, %v985
        %v1020 = vpack.c.bf16 %v988, %v986
        %v1021 = vld [vmem:[%s6] sm:$0xff]
        %v1022 = vld [vmem:[%s6 + $0x8] sm:$0xff]
        %v1023 = vld [vmem:[%s6 + $0x10] sm:$0xff]
        %v1024 = vld [vmem:[%s6 + $0x18] sm:$0xff]
        %v1025 = vld [vmem:[%s6 + $0x20] sm:$0xff]
        %v1026 = vld [vmem:[%s6 + $0x28] sm:$0xff]
        %v1027 = vld [vmem:[%s6 + $0x30] sm:$0xff]
        %v1028 = vld [vmem:[%s6 + $0x38] sm:$0xff]
        %v1029 = vld [vmem:[%s6 + $0x40] sm:$0xff]
        %v1030 = vld [vmem:[%s6 + $0x48] sm:$0xff]
        %v1031 = vld [vmem:[%s6 + $0x50] sm:$0xff]
        %v1032 = vld [vmem:[%s6 + $0x58] sm:$0xff]
        %v1033 = vld [vmem:[%s6 + $0x60] sm:$0xff]
        %v1034 = vld [vmem:[%s6 + $0x68] sm:$0xff]
        %v1035 = vld [vmem:[%s6 + $0x70] sm:$0xff]
        %v1036 = vld [vmem:[%s6 + $0x78] sm:$0xff]
        %1038 = vset.pattern.permute.xlu0 0
        %1039 = vperm.xlu0 %1038, %v1021
        %v1040 = vpop.permute.xlu0 %1039
        %1043 = vset.pattern.permute.xlu0 0
        %1044 = vperm.xlu0 %1043, %v1022
        %v1045 = vpop.permute.xlu0 %1044
        %1048 = vset.pattern.permute.xlu0 0
        %1049 = vperm.xlu0 %1048, %v1023
        %v1050 = vpop.permute.xlu0 %1049
        %1053 = vset.pattern.permute.xlu0 0
        %1054 = vperm.xlu0 %1053, %v1024
        %v1055 = vpop.permute.xlu0 %1054
        %1058 = vset.pattern.permute.xlu0 0
        %1059 = vperm.xlu0 %1058, %v1025
        %v1060 = vpop.permute.xlu0 %1059
        %1063 = vset.pattern.permute.xlu0 0
        %1064 = vperm.xlu0 %1063, %v1026
        %v1065 = vpop.permute.xlu0 %1064
        %1068 = vset.pattern.permute.xlu0 0
        %1069 = vperm.xlu0 %1068, %v1027
        %v1070 = vpop.permute.xlu0 %1069
        %1073 = vset.pattern.permute.xlu0 0
        %1074 = vperm.xlu0 %1073, %v1028
        %v1075 = vpop.permute.xlu0 %1074
        %1078 = vset.pattern.permute.xlu0 0
        %1079 = vperm.xlu0 %1078, %v1029
        %v1080 = vpop.permute.xlu0 %1079
        %1083 = vset.pattern.permute.xlu0 0
        %1084 = vperm.xlu0 %1083, %v1030
        %v1085 = vpop.permute.xlu0 %1084
        %1088 = vset.pattern.permute.xlu0 0
        %1089 = vperm.xlu0 %1088, %v1031
        %v1090 = vpop.permute.xlu0 %1089
        %1093 = vset.pattern.permute.xlu0 0
        %1094 = vperm.xlu0 %1093, %v1032
        %v1095 = vpop.permute.xlu0 %1094
        %1098 = vset.pattern.permute.xlu0 0
        %1099 = vperm.xlu0 %1098, %v1033
        %v1100 = vpop.permute.xlu0 %1099
        %1103 = vset.pattern.permute.xlu0 0
        %1104 = vperm.xlu0 %1103, %v1034
        %v1105 = vpop.permute.xlu0 %1104
        %1108 = vset.pattern.permute.xlu0 0
        %1109 = vperm.xlu0 %1108, %v1035
        %v1110 = vpop.permute.xlu0 %1109
        %1113 = vset.pattern.permute.xlu0 0
        %1114 = vperm.xlu0 %1113, %v1036
        %v1115 = vpop.permute.xlu0 %1114
        %v1133 = vunpack.c.l.b16 %v989
        %v1134 = vunpack.c.l.b16 %v990
        %v1135 = vunpack.c.l.b16 %v991
        %v1136 = vunpack.c.l.b16 %v992
        %v1137 = vunpack.c.l.b16 %v993
        %v1138 = vunpack.c.l.b16 %v994
        %v1139 = vunpack.c.l.b16 %v995
        %v1140 = vunpack.c.l.b16 %v996
        %v1141 = vunpack.c.l.b16 %v997
        %v1142 = vunpack.c.l.b16 %v998
        %v1143 = vunpack.c.l.b16 %v999
        %v1144 = vunpack.c.l.b16 %v1000
        %v1145 = vunpack.c.l.b16 %v1001
        %v1146 = vunpack.c.l.b16 %v1002
        %v1147 = vunpack.c.l.b16 %v1003
        %v1148 = vunpack.c.l.b16 %v1004
        %v1149 = vpack.c.b16 %v1134, %v1133
        %v1150 = vpack.c.b16 %v1136, %v1135
        %v1151 = vpack.c.b16 %v1138, %v1137
        %v1152 = vpack.c.b16 %v1140, %v1139
        %v1153 = vpack.c.b16 %v1142, %v1141
        %v1154 = vpack.c.b16 %v1144, %v1143
        %v1155 = vpack.c.b16 %v1146, %v1145
        %v1156 = vpack.c.b16 %v1148, %v1147
        %1165 = vmatpush.bf16.msra.mxu0 %v1019
        %1166 = vmatpush.bf16.msra.mxu0 %v1017
        %1167 = vmatpush.bf16.msra.mxu0 %v1015
        %1168 = vmatpush.bf16.msra.mxu0 %v1013
        %1169 = vmatpush.bf16.msra.mxu0 %v1011
        %1170 = vmatpush.bf16.msra.mxu0 %v1009
        %1171 = vmatpush.bf16.msra.mxu0 %v1007
        %1172 = vmatpush.bf16.msra.mxu0 %v1005
        %1173 = vmatmul.bf16.gmra.mxu0 %v1149
        %v1174 = vpop.f32.mrf.mxu0
        %v1175 = vadd.f32 %v1040, %v1174
        %v1176 = vpop.f32.mrf.mxu0
        %v1177 = vadd.f32 %v1045, %v1176
        %1178 = vmatmul.bf16.gmra.mxu0 %v1150
        %v1179 = vpop.f32.mrf.mxu0
        %v1180 = vadd.f32 %v1050, %v1179
        %v1181 = vpop.f32.mrf.mxu0
        %v1182 = vadd.f32 %v1055, %v1181
        %1183 = vmatmul.bf16.gmra.mxu0 %v1151
        %v1184 = vpop.f32.mrf.mxu0
        %v1185 = vadd.f32 %v1060, %v1184
        %v1186 = vpop.f32.mrf.mxu0
        %v1187 = vadd.f32 %v1065, %v1186
        %1188 = vmatmul.bf16.gmra.mxu0 %v1152
        %v1189 = vpop.f32.mrf.mxu0
        %v1190 = vadd.f32 %v1070, %v1189
        %v1191 = vpop.f32.mrf.mxu0
        %v1192 = vadd.f32 %v1075, %v1191
        %1193 = vmatmul.bf16.gmra.mxu0 %v1153
        %v1194 = vpop.f32.mrf.mxu0
        %v1195 = vadd.f32 %v1080, %v1194
        %v1196 = vpop.f32.mrf.mxu0
        %v1197 = vadd.f32 %v1085, %v1196
        %1198 = vmatmul.bf16.gmra.mxu0 %v1154
        %v1199 = vpop.f32.mrf.mxu0
        %v1200 = vadd.f32 %v1090, %v1199
        %v1201 = vpop.f32.mrf.mxu0
        %v1202 = vadd.f32 %v1095, %v1201
        %1203 = vmatmul.bf16.gmra.mxu0 %v1155
        %v1204 = vpop.f32.mrf.mxu0
        %v1205 = vadd.f32 %v1100, %v1204
        %v1206 = vpop.f32.mrf.mxu0
        %v1207 = vadd.f32 %v1105, %v1206
        %1208 = vmatmul.bf16.gmra.mxu0 %v1156
        %v1209 = vpop.f32.mrf.mxu0
        %v1210 = vadd.f32 %v1110, %v1209
        %v1211 = vpop.f32.mrf.mxu0
        %v1212 = vadd.f32 %v1115, %v1211
        %1213 = vdwg.mxu0
        %1214 = vmatpush.bf16.msra.mxu0 %v1020
        %1215 = vmatpush.bf16.msra.mxu0 %v1018
        %1216 = vmatpush.bf16.msra.mxu0 %v1016
        %1217 = vmatpush.bf16.msra.mxu0 %v1014
        %1218 = vmatpush.bf16.msra.mxu0 %v1012
        %1219 = vmatpush.bf16.msra.mxu0 %v1010
        %1220 = vmatpush.bf16.msra.mxu0 %v1008
        %1221 = vmatpush.bf16.msra.mxu0 %v1006
        %1222 = vmatmul.bf16.gmra.mxu0 %v1149
        %v1223 = vpop.f32.mrf.mxu0
        %v1224 = vadd.f32 %v1040, %v1223
        %v1225 = vpop.f32.mrf.mxu0
        %v1226 = vadd.f32 %v1045, %v1225
        %1227 = vmatmul.bf16.gmra.mxu0 %v1150
        %v1228 = vpop.f32.mrf.mxu0
        %v1229 = vadd.f32 %v1050, %v1228
        %v1230 = vpop.f32.mrf.mxu0
        %v1231 = vadd.f32 %v1055, %v1230
        %1232 = vmatmul.bf16.gmra.mxu0 %v1151
        %v1233 = vpop.f32.mrf.mxu0
        %v1234 = vadd.f32 %v1060, %v1233
        %v1235 = vpop.f32.mrf.mxu0
        %v1236 = vadd.f32 %v1065, %v1235
        %1237 = vmatmul.bf16.gmra.mxu0 %v1152
        %v1238 = vpop.f32.mrf.mxu0
        %v1239 = vadd.f32 %v1070, %v1238
        %v1240 = vpop.f32.mrf.mxu0
        %v1241 = vadd.f32 %v1075, %v1240
        %1242 = vmatmul.bf16.gmra.mxu0 %v1153
        %v1243 = vpop.f32.mrf.mxu0
        %v1244 = vadd.f32 %v1080, %v1243
        %v1245 = vpop.f32.mrf.mxu0
        %v1246 = vadd.f32 %v1085, %v1245
        %1247 = vmatmul.bf16.gmra.mxu0 %v1154
        %v1248 = vpop.f32.mrf.mxu0
        %v1249 = vadd.f32 %v1090, %v1248
        %v1250 = vpop.f32.mrf.mxu0
        %v1251 = vadd.f32 %v1095, %v1250
        %1252 = vmatmul.bf16.gmra.mxu0 %v1155
        %v1253 = vpop.f32.mrf.mxu0
        %v1254 = vadd.f32 %v1100, %v1253
        %v1255 = vpop.f32.mrf.mxu0
        %v1256 = vadd.f32 %v1105, %v1255
        %1257 = vmatmul.bf16.gmra.mxu0 %v1156
        %v1258 = vpop.f32.mrf.mxu0
        %v1259 = vadd.f32 %v1110, %v1258
        %v1260 = vpop.f32.mrf.mxu0
        %v1261 = vadd.f32 %v1115, %v1260
        %1262 = vdwg.mxu0
        %v1263 = vmax.f32 %v1175, 0.0
        %v1264 = vmax.f32 %v1224, 0.0
        %v1265 = vmax.f32 %v1177, 0.0
        %v1266 = vmax.f32 %v1226, 0.0
        %v1267 = vmax.f32 %v1180, 0.0
        %v1268 = vmax.f32 %v1229, 0.0
        %v1269 = vmax.f32 %v1182, 0.0
        %v1270 = vmax.f32 %v1231, 0.0
        %v1271 = vmax.f32 %v1185, 0.0
        %v1272 = vmax.f32 %v1234, 0.0
        %v1273 = vmax.f32 %v1187, 0.0
        %v1274 = vmax.f32 %v1236, 0.0
        %v1275 = vmax.f32 %v1190, 0.0
        %v1276 = vmax.f32 %v1239, 0.0
        %v1277 = vmax.f32 %v1192, 0.0
        %v1278 = vmax.f32 %v1241, 0.0
        %v1279 = vmax.f32 %v1195, 0.0
        %v1280 = vmax.f32 %v1244, 0.0
        %v1281 = vmax.f32 %v1197, 0.0
        %v1282 = vmax.f32 %v1246, 0.0
        %v1283 = vmax.f32 %v1200, 0.0
        %v1284 = vmax.f32 %v1249, 0.0
        %v1285 = vmax.f32 %v1202, 0.0
        %v1286 = vmax.f32 %v1251, 0.0
        %v1287 = vmax.f32 %v1205, 0.0
        %v1288 = vmax.f32 %v1254, 0.0
        %v1289 = vmax.f32 %v1207, 0.0
        %v1290 = vmax.f32 %v1256, 0.0
        %v1291 = vmax.f32 %v1210, 0.0
        %v1292 = vmax.f32 %v1259, 0.0
        %v1293 = vmax.f32 %v1212, 0.0
        %v1294 = vmax.f32 %v1261, 0.0
        %v1295 = vpack.c.bf16 %v1265, %v1263
        %v1296 = vpack.c.bf16 %v1266, %v1264
        %v1297 = vpack.c.bf16 %v1269, %v1267
        %v1298 = vpack.c.bf16 %v1270, %v1268
        %v1299 = vpack.c.bf16 %v1273, %v1271
        %v1300 = vpack.c.bf16 %v1274, %v1272
        %v1301 = vpack.c.bf16 %v1277, %v1275
        %v1302 = vpack.c.bf16 %v1278, %v1276
        %v1303 = vpack.c.bf16 %v1281, %v1279
        %v1304 = vpack.c.bf16 %v1282, %v1280
        %v1305 = vpack.c.bf16 %v1285, %v1283
        %v1306 = vpack.c.bf16 %v1286, %v1284
        %v1307 = vpack.c.bf16 %v1289, %v1287
        %v1308 = vpack.c.bf16 %v1290, %v1288
        %v1309 = vpack.c.bf16 %v1293, %v1291
        %v1310 = vpack.c.bf16 %v1294, %v1292
        %v1311 = vld [vmem:[%s7] sm:$0xf]
        %v1312 = vld [vmem:[%s7 + $0x4] sm:$0xf]
        %v1313 = vld [vmem:[%s7 + $0x8] sm:$0xf]
        %v1314 = vld [vmem:[%s7 + $0xc] sm:$0xf]
        %v1315 = vld [vmem:[%s7 + $0x10] sm:$0xf]
        %v1316 = vld [vmem:[%s7 + $0x14] sm:$0xf]
        %v1317 = vld [vmem:[%s7 + $0x18] sm:$0xf]
        %v1318 = vld [vmem:[%s7 + $0x1c] sm:$0xf]
        %v1319 = vld [vmem:[%s7 + $0x20] sm:$0xf]
        %v1320 = vld [vmem:[%s7 + $0x24] sm:$0xf]
        %v1321 = vld [vmem:[%s7 + $0x28] sm:$0xf]
        %v1322 = vld [vmem:[%s7 + $0x2c] sm:$0xf]
        %v1323 = vld [vmem:[%s7 + $0x30] sm:$0xf]
        %v1324 = vld [vmem:[%s7 + $0x34] sm:$0xf]
        %v1325 = vld [vmem:[%s7 + $0x38] sm:$0xf]
        %v1326 = vld [vmem:[%s7 + $0x3c] sm:$0xf]
        %v1327 = vld [vmem:[%s8] sm:$0xff]
        %v1328 = vld [vmem:[%s8 + $0x8] sm:$0xff]
        %v1329 = vld [vmem:[%s8 + $0x10] sm:$0xff]
        %v1330 = vld [vmem:[%s8 + $0x18] sm:$0xff]
        %v1331 = vld [vmem:[%s8 + $0x20] sm:$0xff]
        %v1332 = vld [vmem:[%s8 + $0x28] sm:$0xff]
        %v1333 = vld [vmem:[%s8 + $0x30] sm:$0xff]
        %v1334 = vld [vmem:[%s8 + $0x38] sm:$0xff]
        %v1335 = vld [vmem:[%s8 + $0x40] sm:$0xff]
        %v1336 = vld [vmem:[%s8 + $0x48] sm:$0xff]
        %v1337 = vld [vmem:[%s8 + $0x50] sm:$0xff]
        %v1338 = vld [vmem:[%s8 + $0x58] sm:$0xff]
        %v1339 = vld [vmem:[%s8 + $0x60] sm:$0xff]
        %v1340 = vld [vmem:[%s8 + $0x68] sm:$0xff]
        %v1341 = vld [vmem:[%s8 + $0x70] sm:$0xff]
        %v1342 = vld [vmem:[%s8 + $0x78] sm:$0xff]
        %1344 = vset.pattern.permute.xlu0 0
        %1345 = vperm.xlu0 %1344, %v1327
        %v1346 = vpop.permute.xlu0 %1345
        %1349 = vset.pattern.permute.xlu0 0
        %1350 = vperm.xlu0 %1349, %v1328
        %v1351 = vpop.permute.xlu0 %1350
        %1354 = vset.pattern.permute.xlu0 0
        %1355 = vperm.xlu0 %1354, %v1329
        %v1356 = vpop.permute.xlu0 %1355
        %1359 = vset.pattern.permute.xlu0 0
        %1360 = vperm.xlu0 %1359, %v1330
        %v1361 = vpop.permute.xlu0 %1360
        %1364 = vset.pattern.permute.xlu0 0
        %1365 = vperm.xlu0 %1364, %v1331
        %v1366 = vpop.permute.xlu0 %1365
        %1369 = vset.pattern.permute.xlu0 0
        %1370 = vperm.xlu0 %1369, %v1332
        %v1371 = vpop.permute.xlu0 %1370
        %1374 = vset.pattern.permute.xlu0 0
        %1375 = vperm.xlu0 %1374, %v1333
        %v1376 = vpop.permute.xlu0 %1375
        %1379 = vset.pattern.permute.xlu0 0
        %1380 = vperm.xlu0 %1379, %v1334
        %v1381 = vpop.permute.xlu0 %1380
        %1384 = vset.pattern.permute.xlu0 0
        %1385 = vperm.xlu0 %1384, %v1335
        %v1386 = vpop.permute.xlu0 %1385
        %1389 = vset.pattern.permute.xlu0 0
        %1390 = vperm.xlu0 %1389, %v1336
        %v1391 = vpop.permute.xlu0 %1390
        %1394 = vset.pattern.permute.xlu0 0
        %1395 = vperm.xlu0 %1394, %v1337
        %v1396 = vpop.permute.xlu0 %1395
        %1399 = vset.pattern.permute.xlu0 0
        %1400 = vperm.xlu0 %1399, %v1338
        %v1401 = vpop.permute.xlu0 %1400
        %1404 = vset.pattern.permute.xlu0 0
        %1405 = vperm.xlu0 %1404, %v1339
        %v1406 = vpop.permute.xlu0 %1405
        %1409 = vset.pattern.permute.xlu0 0
        %1410 = vperm.xlu0 %1409, %v1340
        %v1411 = vpop.permute.xlu0 %1410
        %1414 = vset.pattern.permute.xlu0 0
        %1415 = vperm.xlu0 %1414, %v1341
        %v1416 = vpop.permute.xlu0 %1415
        %1419 = vset.pattern.permute.xlu0 0
        %1420 = vperm.xlu0 %1419, %v1342
        %v1421 = vpop.permute.xlu0 %1420
        %v1439 = vunpack.c.l.b16 %v1311
        %v1440 = vunpack.c.l.b16 %v1312
        %v1441 = vunpack.c.l.b16 %v1313
        %v1442 = vunpack.c.l.b16 %v1314
        %v1443 = vunpack.c.l.b16 %v1315
        %v1444 = vunpack.c.l.b16 %v1316
        %v1445 = vunpack.c.l.b16 %v1317
        %v1446 = vunpack.c.l.b16 %v1318
        %v1447 = vunpack.c.l.b16 %v1319
        %v1448 = vunpack.c.l.b16 %v1320
        %v1449 = vunpack.c.l.b16 %v1321
        %v1450 = vunpack.c.l.b16 %v1322
        %v1451 = vunpack.c.l.b16 %v1323
        %v1452 = vunpack.c.l.b16 %v1324
        %v1453 = vunpack.c.l.b16 %v1325
        %v1454 = vunpack.c.l.b16 %v1326
        %v1455 = vpack.c.b16 %v1440, %v1439
        %v1456 = vpack.c.b16 %v1442, %v1441
        %v1457 = vpack.c.b16 %v1444, %v1443
        %v1458 = vpack.c.b16 %v1446, %v1445
        %v1459 = vpack.c.b16 %v1448, %v1447
        %v1460 = vpack.c.b16 %v1450, %v1449
        %v1461 = vpack.c.b16 %v1452, %v1451
        %v1462 = vpack.c.b16 %v1454, %v1453
        %1471 = vmatpush.bf16.msra.mxu0 %v1309
        %1472 = vmatpush.bf16.msra.mxu0 %v1307
        %1473 = vmatpush.bf16.msra.mxu0 %v1305
        %1474 = vmatpush.bf16.msra.mxu0 %v1303
        %1475 = vmatpush.bf16.msra.mxu0 %v1301
        %1476 = vmatpush.bf16.msra.mxu0 %v1299
        %1477 = vmatpush.bf16.msra.mxu0 %v1297
        %1478 = vmatpush.bf16.msra.mxu0 %v1295
        %1479 = vmatmul.bf16.gmra.mxu0 %v1455
        %v1480 = vpop.f32.mrf.mxu0
        %v1481 = vadd.f32 %v1346, %v1480
        %v1482 = vpop.f32.mrf.mxu0
        %v1483 = vadd.f32 %v1351, %v1482
        %1484 = vmatmul.bf16.gmra.mxu0 %v1456
        %v1485 = vpop.f32.mrf.mxu0
        %v1486 = vadd.f32 %v1356, %v1485
        %v1487 = vpop.f32.mrf.mxu0
        %v1488 = vadd.f32 %v1361, %v1487
        %1489 = vmatmul.bf16.gmra.mxu0 %v1457
        %v1490 = vpop.f32.mrf.mxu0
        %v1491 = vadd.f32 %v1366, %v1490
        %v1492 = vpop.f32.mrf.mxu0
        %v1493 = vadd.f32 %v1371, %v1492
        %1494 = vmatmul.bf16.gmra.mxu0 %v1458
        %v1495 = vpop.f32.mrf.mxu0
        %v1496 = vadd.f32 %v1376, %v1495
        %v1497 = vpop.f32.mrf.mxu0
        %v1498 = vadd.f32 %v1381, %v1497
        %1499 = vmatmul.bf16.gmra.mxu0 %v1459
        %v1500 = vpop.f32.mrf.mxu0
        %v1501 = vadd.f32 %v1386, %v1500
        %v1502 = vpop.f32.mrf.mxu0
        %v1503 = vadd.f32 %v1391, %v1502
        %1504 = vmatmul.bf16.gmra.mxu0 %v1460
        %v1505 = vpop.f32.mrf.mxu0
        %v1506 = vadd.f32 %v1396, %v1505
        %v1507 = vpop.f32.mrf.mxu0
        %v1508 = vadd.f32 %v1401, %v1507
        %1509 = vmatmul.bf16.gmra.mxu0 %v1461
        %v1510 = vpop.f32.mrf.mxu0
        %v1511 = vadd.f32 %v1406, %v1510
        %v1512 = vpop.f32.mrf.mxu0
        %v1513 = vadd.f32 %v1411, %v1512
        %1514 = vmatmul.bf16.gmra.mxu0 %v1462
        %v1515 = vpop.f32.mrf.mxu0
        %v1516 = vadd.f32 %v1416, %v1515
        %v1517 = vpop.f32.mrf.mxu0
        %v1518 = vadd.f32 %v1421, %v1517
        %1519 = vdwg.mxu0
        %1520 = vmatpush.bf16.msra.mxu0 %v1310
        %1521 = vmatpush.bf16.msra.mxu0 %v1308
        %1522 = vmatpush.bf16.msra.mxu0 %v1306
        %1523 = vmatpush.bf16.msra.mxu0 %v1304
        %1524 = vmatpush.bf16.msra.mxu0 %v1302
        %1525 = vmatpush.bf16.msra.mxu0 %v1300
        %1526 = vmatpush.bf16.msra.mxu0 %v1298
        %1527 = vmatpush.bf16.msra.mxu0 %v1296
        %1528 = vmatmul.bf16.gmra.mxu0 %v1455
        %v1529 = vpop.f32.mrf.mxu0
        %v1530 = vadd.f32 %v1346, %v1529
        %v1531 = vpop.f32.mrf.mxu0
        %v1532 = vadd.f32 %v1351, %v1531
        %1533 = vmatmul.bf16.gmra.mxu0 %v1456
        %v1534 = vpop.f32.mrf.mxu0
        %v1535 = vadd.f32 %v1356, %v1534
        %v1536 = vpop.f32.mrf.mxu0
        %v1537 = vadd.f32 %v1361, %v1536
        %1538 = vmatmul.bf16.gmra.mxu0 %v1457
        %v1539 = vpop.f32.mrf.mxu0
        %v1540 = vadd.f32 %v1366, %v1539
        %v1541 = vpop.f32.mrf.mxu0
        %v1542 = vadd.f32 %v1371, %v1541
        %1543 = vmatmul.bf16.gmra.mxu0 %v1458
        %v1544 = vpop.f32.mrf.mxu0
        %v1545 = vadd.f32 %v1376, %v1544
        %v1546 = vpop.f32.mrf.mxu0
        %v1547 = vadd.f32 %v1381, %v1546
        %1548 = vmatmul.bf16.gmra.mxu0 %v1459
        %v1549 = vpop.f32.mrf.mxu0
        %v1550 = vadd.f32 %v1386, %v1549
        %v1551 = vpop.f32.mrf.mxu0
        %v1552 = vadd.f32 %v1391, %v1551
        %1553 = vmatmul.bf16.gmra.mxu0 %v1460
        %v1554 = vpop.f32.mrf.mxu0
        %v1555 = vadd.f32 %v1396, %v1554
        %v1556 = vpop.f32.mrf.mxu0
        %v1557 = vadd.f32 %v1401, %v1556
        %1558 = vmatmul.bf16.gmra.mxu0 %v1461
        %v1559 = vpop.f32.mrf.mxu0
        %v1560 = vadd.f32 %v1406, %v1559
        %v1561 = vpop.f32.mrf.mxu0
        %v1562 = vadd.f32 %v1411, %v1561
        %1563 = vmatmul.bf16.gmra.mxu0 %v1462
        %v1564 = vpop.f32.mrf.mxu0
        %v1565 = vadd.f32 %v1416, %v1564
        %v1566 = vpop.f32.mrf.mxu0
        %v1567 = vadd.f32 %v1421, %v1566
        %1568 = vdwg.mxu0
        %v1569 = vxor.u32 %v1481, 2147483648
        %v1570 = vxor.u32 %v1530, 2147483648
        %v1571 = vxor.u32 %v1483, 2147483648
        %v1572 = vxor.u32 %v1532, 2147483648
        %v1573 = vxor.u32 %v1486, 2147483648
        %v1574 = vxor.u32 %v1535, 2147483648
        %v1575 = vxor.u32 %v1488, 2147483648
        %v1576 = vxor.u32 %v1537, 2147483648
        %v1577 = vxor.u32 %v1491, 2147483648
        %v1578 = vxor.u32 %v1540, 2147483648
        %v1579 = vxor.u32 %v1493, 2147483648
        %v1580 = vxor.u32 %v1542, 2147483648
        %v1581 = vxor.u32 %v1496, 2147483648
        %v1582 = vxor.u32 %v1545, 2147483648
        %v1583 = vxor.u32 %v1498, 2147483648
        %v1584 = vxor.u32 %v1547, 2147483648
        %v1585 = vxor.u32 %v1501, 2147483648
        %v1586 = vxor.u32 %v1550, 2147483648
        %v1587 = vxor.u32 %v1503, 2147483648
        %v1588 = vxor.u32 %v1552, 2147483648
        %v1589 = vxor.u32 %v1506, 2147483648
        %v1590 = vxor.u32 %v1555, 2147483648
        %v1591 = vxor.u32 %v1508, 2147483648
        %v1592 = vxor.u32 %v1557, 2147483648
        %v1593 = vxor.u32 %v1511, 2147483648
        %v1594 = vxor.u32 %v1560, 2147483648
        %v1595 = vxor.u32 %v1513, 2147483648
        %v1596 = vxor.u32 %v1562, 2147483648
        %v1597 = vxor.u32 %v1516, 2147483648
        %v1598 = vxor.u32 %v1565, 2147483648
        %v1599 = vxor.u32 %v1518, 2147483648
        %v1600 = vxor.u32 %v1567, 2147483648
        %v1601 = vmul.f32 %v1569, 1.442695
        %v1602 = vpow.pop %v1601
        %v1603 = vmul.f32 %v1570, 1.442695
        %v1604 = vpow.pop %v1603
        %v1605 = vmul.f32 %v1571, 1.442695
        %v1606 = vpow.pop %v1605
        %v1607 = vmul.f32 %v1572, 1.442695
        %v1608 = vpow.pop %v1607
        %v1609 = vmul.f32 %v1573, 1.442695
        %v1610 = vpow.pop %v1609
        %v1611 = vmul.f32 %v1574, 1.442695
        %v1612 = vpow.pop %v1611
        %v1613 = vmul.f32 %v1575, 1.442695
        %v1614 = vpow.pop %v1613
        %v1615 = vmul.f32 %v1576, 1.442695
        %v1616 = vpow.pop %v1615
        %v1617 = vmul.f32 %v1577, 1.442695
        %v1618 = vpow.pop %v1617
        %v1619 = vmul.f32 %v1578, 1.442695
        %v1620 = vpow.pop %v1619
        %v1621 = vmul.f32 %v1579, 1.442695
        %v1622 = vpow.pop %v1621
        %v1623 = vmul.f32 %v1580, 1.442695
        %v1624 = vpow.pop %v1623
        %v1625 = vmul.f32 %v1581, 1.442695
        %v1626 = vpow.pop %v1625
        %v1627 = vmul.f32 %v1582, 1.442695
        %v1628 = vpow.pop %v1627
        %v1629 = vmul.f32 %v1583, 1.442695
        %v1630 = vpow.pop %v1629
        %v1631 = vmul.f32 %v1584, 1.442695
        %v1632 = vpow.pop %v1631
        %v1633 = vmul.f32 %v1585, 1.442695
        %v1634 = vpow.pop %v1633
        %v1635 = vmul.f32 %v1586, 1.442695
        %v1636 = vpow.pop %v1635
        %v1637 = vmul.f32 %v1587, 1.442695
        %v1638 = vpow.pop %v1637
        %v1639 = vmul.f32 %v1588, 1.442695
        %v1640 = vpow.pop %v1639
        %v1641 = vmul.f32 %v1589, 1.442695
        %v1642 = vpow.pop %v1641
        %v1643 = vmul.f32 %v1590, 1.442695
        %v1644 = vpow.pop %v1643
        %v1645 = vmul.f32 %v1591, 1.442695
        %v1646 = vpow.pop %v1645
        %v1647 = vmul.f32 %v1592, 1.442695
        %v1648 = vpow.pop %v1647
        %v1649 = vmul.f32 %v1593, 1.442695
        %v1650 = vpow.pop %v1649
        %v1651 = vmul.f32 %v1594, 1.442695
        %v1652 = vpow.pop %v1651
        %v1653 = vmul.f32 %v1595, 1.442695
        %v1654 = vpow.pop %v1653
        %v1655 = vmul.f32 %v1596, 1.442695
        %v1656 = vpow.pop %v1655
        %v1657 = vmul.f32 %v1597, 1.442695
        %v1658 = vpow.pop %v1657
        %v1659 = vmul.f32 %v1598, 1.442695
        %v1660 = vpow.pop %v1659
        %v1661 = vmul.f32 %v1599, 1.442695
        %v1662 = vpow.pop %v1661
        %v1663 = vmul.f32 %v1600, 1.442695
        %v1664 = vpow.pop %v1663
        %v1665 = vadd.f32 %v1602, 1.0
        %v1666 = vadd.f32 %v1604, 1.0
        %v1667 = vadd.f32 %v1606, 1.0
        %v1668 = vadd.f32 %v1608, 1.0
        %v1669 = vadd.f32 %v1610, 1.0
        %v1670 = vadd.f32 %v1612, 1.0
        %v1671 = vadd.f32 %v1614, 1.0
        %v1672 = vadd.f32 %v1616, 1.0
        %v1673 = vadd.f32 %v1618, 1.0
        %v1674 = vadd.f32 %v1620, 1.0
        %v1675 = vadd.f32 %v1622, 1.0
        %v1676 = vadd.f32 %v1624, 1.0
        %v1677 = vadd.f32 %v1626, 1.0
        %v1678 = vadd.f32 %v1628, 1.0
        %v1679 = vadd.f32 %v1630, 1.0
        %v1680 = vadd.f32 %v1632, 1.0
        %v1681 = vadd.f32 %v1634, 1.0
        %v1682 = vadd.f32 %v1636, 1.0
        %v1683 = vadd.f32 %v1638, 1.0
        %v1684 = vadd.f32 %v1640, 1.0
        %v1685 = vadd.f32 %v1642, 1.0
        %v1686 = vadd.f32 %v1644, 1.0
        %v1687 = vadd.f32 %v1646, 1.0
        %v1688 = vadd.f32 %v1648, 1.0
        %v1689 = vadd.f32 %v1650, 1.0
        %v1690 = vadd.f32 %v1652, 1.0
        %v1691 = vadd.f32 %v1654, 1.0
        %v1692 = vadd.f32 %v1656, 1.0
        %v1693 = vadd.f32 %v1658, 1.0
        %v1694 = vadd.f32 %v1660, 1.0
        %v1695 = vadd.f32 %v1662, 1.0
        %v1696 = vadd.f32 %v1664, 1.0
        %v1697 = vrcp.pop %v1665
        %v1698 = vmul.f32 %v1665, %v1697
        %v1699 = vsub.f32 1.0, %v1698
        %v1700 = vmul.f32 %v1697, %v1699
        %v1701 = vadd.f32 %v1697, %v1700
        %vm1702 = vweird.f32 %v1665
        %vm1703 = vweird.f32 %v1697
        %vm1704 = vmor %vm1702, %vm1703
        %v1705 = vsel %vm1704, %v1697, %v1701
        %v1706 = vand.u32 2147483647, %v1665
        %vm1707 = vcmp.eq.f32.partialorder %v1706, 8.507059e+37
        %v1708 = vand.u32 %v1665, 2147483648
        %v1709 = vor.u32 1.1754944e-38, %v1708
        %v1710 = vsel %vm1707, %v1709, %v1705
        %v1711 = vmul.f32 1.0, %v1710
        %v1712 = vrcp.pop %v1666
        %v1713 = vmul.f32 %v1666, %v1712
        %v1714 = vsub.f32 1.0, %v1713
        %v1715 = vmul.f32 %v1712, %v1714
        %v1716 = vadd.f32 %v1712, %v1715
        %vm1717 = vweird.f32 %v1666
        %vm1718 = vweird.f32 %v1712
        %vm1719 = vmor %vm1717, %vm1718
        %v1720 = vsel %vm1719, %v1712, %v1716
        %v1721 = vand.u32 2147483647, %v1666
        %vm1722 = vcmp.eq.f32.partialorder %v1721, 8.507059e+37
        %v1723 = vand.u32 %v1666, 2147483648
        %v1724 = vor.u32 1.1754944e-38, %v1723
        %v1725 = vsel %vm1722, %v1724, %v1720
        %v1726 = vmul.f32 1.0, %v1725
        %v1727 = vrcp.pop %v1667
        %v1728 = vmul.f32 %v1667, %v1727
        %v1729 = vsub.f32 1.0, %v1728
        %v1730 = vmul.f32 %v1727, %v1729
        %v1731 = vadd.f32 %v1727, %v1730
        %vm1732 = vweird.f32 %v1667
        %vm1733 = vweird.f32 %v1727
        %vm1734 = vmor %vm1732, %vm1733
        %v1735 = vsel %vm1734, %v1727, %v1731
        %v1736 = vand.u32 2147483647, %v1667
        %vm1737 = vcmp.eq.f32.partialorder %v1736, 8.507059e+37
        %v1738 = vand.u32 %v1667, 2147483648
        %v1739 = vor.u32 1.1754944e-38, %v1738
        %v1740 = vsel %vm1737, %v1739, %v1735
        %v1741 = vmul.f32 1.0, %v1740
        %v1742 = vrcp.pop %v1668
        %v1743 = vmul.f32 %v1668, %v1742
        %v1744 = vsub.f32 1.0, %v1743
        %v1745 = vmul.f32 %v1742, %v1744
        %v1746 = vadd.f32 %v1742, %v1745
        %vm1747 = vweird.f32 %v1668
        %vm1748 = vweird.f32 %v1742
        %vm1749 = vmor %vm1747, %vm1748
        %v1750 = vsel %vm1749, %v1742, %v1746
        %v1751 = vand.u32 2147483647, %v1668
        %vm1752 = vcmp.eq.f32.partialorder %v1751, 8.507059e+37
        %v1753 = vand.u32 %v1668, 2147483648
        %v1754 = vor.u32 1.1754944e-38, %v1753
        %v1755 = vsel %vm1752, %v1754, %v1750
        %v1756 = vmul.f32 1.0, %v1755
        %v1757 = vrcp.pop %v1669
        %v1758 = vmul.f32 %v1669, %v1757
        %v1759 = vsub.f32 1.0, %v1758
        %v1760 = vmul.f32 %v1757, %v1759
        %v1761 = vadd.f32 %v1757, %v1760
        %vm1762 = vweird.f32 %v1669
        %vm1763 = vweird.f32 %v1757
        %vm1764 = vmor %vm1762, %vm1763
        %v1765 = vsel %vm1764, %v1757, %v1761
        %v1766 = vand.u32 2147483647, %v1669
        %vm1767 = vcmp.eq.f32.partialorder %v1766, 8.507059e+37
        %v1768 = vand.u32 %v1669, 2147483648
        %v1769 = vor.u32 1.1754944e-38, %v1768
        %v1770 = vsel %vm1767, %v1769, %v1765
        %v1771 = vmul.f32 1.0, %v1770
        %v1772 = vrcp.pop %v1670
        %v1773 = vmul.f32 %v1670, %v1772
        %v1774 = vsub.f32 1.0, %v1773
        %v1775 = vmul.f32 %v1772, %v1774
        %v1776 = vadd.f32 %v1772, %v1775
        %vm1777 = vweird.f32 %v1670
        %vm1778 = vweird.f32 %v1772
        %vm1779 = vmor %vm1777, %vm1778
        %v1780 = vsel %vm1779, %v1772, %v1776
        %v1781 = vand.u32 2147483647, %v1670
        %vm1782 = vcmp.eq.f32.partialorder %v1781, 8.507059e+37
        %v1783 = vand.u32 %v1670, 2147483648
        %v1784 = vor.u32 1.1754944e-38, %v1783
        %v1785 = vsel %vm1782, %v1784, %v1780
        %v1786 = vmul.f32 1.0, %v1785
        %v1787 = vrcp.pop %v1671
        %v1788 = vmul.f32 %v1671, %v1787
        %v1789 = vsub.f32 1.0, %v1788
        %v1790 = vmul.f32 %v1787, %v1789
        %v1791 = vadd.f32 %v1787, %v1790
        %vm1792 = vweird.f32 %v1671
        %vm1793 = vweird.f32 %v1787
        %vm1794 = vmor %vm1792, %vm1793
        %v1795 = vsel %vm1794, %v1787, %v1791
        %v1796 = vand.u32 2147483647, %v1671
        %vm1797 = vcmp.eq.f32.partialorder %v1796, 8.507059e+37
        %v1798 = vand.u32 %v1671, 2147483648
        %v1799 = vor.u32 1.1754944e-38, %v1798
        %v1800 = vsel %vm1797, %v1799, %v1795
        %v1801 = vmul.f32 1.0, %v1800
        %v1802 = vrcp.pop %v1672
        %v1803 = vmul.f32 %v1672, %v1802
        %v1804 = vsub.f32 1.0, %v1803
        %v1805 = vmul.f32 %v1802, %v1804
        %v1806 = vadd.f32 %v1802, %v1805
        %vm1807 = vweird.f32 %v1672
        %vm1808 = vweird.f32 %v1802
        %vm1809 = vmor %vm1807, %vm1808
        %v1810 = vsel %vm1809, %v1802, %v1806
        %v1811 = vand.u32 2147483647, %v1672
        %vm1812 = vcmp.eq.f32.partialorder %v1811, 8.507059e+37
        %v1813 = vand.u32 %v1672, 2147483648
        %v1814 = vor.u32 1.1754944e-38, %v1813
        %v1815 = vsel %vm1812, %v1814, %v1810
        %v1816 = vmul.f32 1.0, %v1815
        %v1817 = vrcp.pop %v1673
        %v1818 = vmul.f32 %v1673, %v1817
        %v1819 = vsub.f32 1.0, %v1818
        %v1820 = vmul.f32 %v1817, %v1819
        %v1821 = vadd.f32 %v1817, %v1820
        %vm1822 = vweird.f32 %v1673
        %vm1823 = vweird.f32 %v1817
        %vm1824 = vmor %vm1822, %vm1823
        %v1825 = vsel %vm1824, %v1817, %v1821
        %v1826 = vand.u32 2147483647, %v1673
        %vm1827 = vcmp.eq.f32.partialorder %v1826, 8.507059e+37
        %v1828 = vand.u32 %v1673, 2147483648
        %v1829 = vor.u32 1.1754944e-38, %v1828
        %v1830 = vsel %vm1827, %v1829, %v1825
        %v1831 = vmul.f32 1.0, %v1830
        %v1832 = vrcp.pop %v1674
        %v1833 = vmul.f32 %v1674, %v1832
        %v1834 = vsub.f32 1.0, %v1833
        %v1835 = vmul.f32 %v1832, %v1834
        %v1836 = vadd.f32 %v1832, %v1835
        %vm1837 = vweird.f32 %v1674
        %vm1838 = vweird.f32 %v1832
        %vm1839 = vmor %vm1837, %vm1838
        %v1840 = vsel %vm1839, %v1832, %v1836
        %v1841 = vand.u32 2147483647, %v1674
        %vm1842 = vcmp.eq.f32.partialorder %v1841, 8.507059e+37
        %v1843 = vand.u32 %v1674, 2147483648
        %v1844 = vor.u32 1.1754944e-38, %v1843
        %v1845 = vsel %vm1842, %v1844, %v1840
        %v1846 = vmul.f32 1.0, %v1845
        %v1847 = vrcp.pop %v1675
        %v1848 = vmul.f32 %v1675, %v1847
        %v1849 = vsub.f32 1.0, %v1848
        %v1850 = vmul.f32 %v1847, %v1849
        %v1851 = vadd.f32 %v1847, %v1850
        %vm1852 = vweird.f32 %v1675
        %vm1853 = vweird.f32 %v1847
        %vm1854 = vmor %vm1852, %vm1853
        %v1855 = vsel %vm1854, %v1847, %v1851
        %v1856 = vand.u32 2147483647, %v1675
        %vm1857 = vcmp.eq.f32.partialorder %v1856, 8.507059e+37
        %v1858 = vand.u32 %v1675, 2147483648
        %v1859 = vor.u32 1.1754944e-38, %v1858
        %v1860 = vsel %vm1857, %v1859, %v1855
        %v1861 = vmul.f32 1.0, %v1860
        %v1862 = vrcp.pop %v1676
        %v1863 = vmul.f32 %v1676, %v1862
        %v1864 = vsub.f32 1.0, %v1863
        %v1865 = vmul.f32 %v1862, %v1864
        %v1866 = vadd.f32 %v1862, %v1865
        %vm1867 = vweird.f32 %v1676
        %vm1868 = vweird.f32 %v1862
        %vm1869 = vmor %vm1867, %vm1868
        %v1870 = vsel %vm1869, %v1862, %v1866
        %v1871 = vand.u32 2147483647, %v1676
        %vm1872 = vcmp.eq.f32.partialorder %v1871, 8.507059e+37
        %v1873 = vand.u32 %v1676, 2147483648
        %v1874 = vor.u32 1.1754944e-38, %v1873
        %v1875 = vsel %vm1872, %v1874, %v1870
        %v1876 = vmul.f32 1.0, %v1875
        %v1877 = vrcp.pop %v1677
        %v1878 = vmul.f32 %v1677, %v1877
        %v1879 = vsub.f32 1.0, %v1878
        %v1880 = vmul.f32 %v1877, %v1879
        %v1881 = vadd.f32 %v1877, %v1880
        %vm1882 = vweird.f32 %v1677
        %vm1883 = vweird.f32 %v1877
        %vm1884 = vmor %vm1882, %vm1883
        %v1885 = vsel %vm1884, %v1877, %v1881
        %v1886 = vand.u32 2147483647, %v1677
        %vm1887 = vcmp.eq.f32.partialorder %v1886, 8.507059e+37
        %v1888 = vand.u32 %v1677, 2147483648
        %v1889 = vor.u32 1.1754944e-38, %v1888
        %v1890 = vsel %vm1887, %v1889, %v1885
        %v1891 = vmul.f32 1.0, %v1890
        %v1892 = vrcp.pop %v1678
        %v1893 = vmul.f32 %v1678, %v1892
        %v1894 = vsub.f32 1.0, %v1893
        %v1895 = vmul.f32 %v1892, %v1894
        %v1896 = vadd.f32 %v1892, %v1895
        %vm1897 = vweird.f32 %v1678
        %vm1898 = vweird.f32 %v1892
        %vm1899 = vmor %vm1897, %vm1898
        %v1900 = vsel %vm1899, %v1892, %v1896
        %v1901 = vand.u32 2147483647, %v1678
        %vm1902 = vcmp.eq.f32.partialorder %v1901, 8.507059e+37
        %v1903 = vand.u32 %v1678, 2147483648
        %v1904 = vor.u32 1.1754944e-38, %v1903
        %v1905 = vsel %vm1902, %v1904, %v1900
        %v1906 = vmul.f32 1.0, %v1905
        %v1907 = vrcp.pop %v1679
        %v1908 = vmul.f32 %v1679, %v1907
        %v1909 = vsub.f32 1.0, %v1908
        %v1910 = vmul.f32 %v1907, %v1909
        %v1911 = vadd.f32 %v1907, %v1910
        %vm1912 = vweird.f32 %v1679
        %vm1913 = vweird.f32 %v1907
        %vm1914 = vmor %vm1912, %vm1913
        %v1915 = vsel %vm1914, %v1907, %v1911
        %v1916 = vand.u32 2147483647, %v1679
        %vm1917 = vcmp.eq.f32.partialorder %v1916, 8.507059e+37
        %v1918 = vand.u32 %v1679, 2147483648
        %v1919 = vor.u32 1.1754944e-38, %v1918
        %v1920 = vsel %vm1917, %v1919, %v1915
        %v1921 = vmul.f32 1.0, %v1920
        %v1922 = vrcp.pop %v1680
        %v1923 = vmul.f32 %v1680, %v1922
        %v1924 = vsub.f32 1.0, %v1923
        %v1925 = vmul.f32 %v1922, %v1924
        %v1926 = vadd.f32 %v1922, %v1925
        %vm1927 = vweird.f32 %v1680
        %vm1928 = vweird.f32 %v1922
        %vm1929 = vmor %vm1927, %vm1928
        %v1930 = vsel %vm1929, %v1922, %v1926
        %v1931 = vand.u32 2147483647, %v1680
        %vm1932 = vcmp.eq.f32.partialorder %v1931, 8.507059e+37
        %v1933 = vand.u32 %v1680, 2147483648
        %v1934 = vor.u32 1.1754944e-38, %v1933
        %v1935 = vsel %vm1932, %v1934, %v1930
        %v1936 = vmul.f32 1.0, %v1935
        %v1937 = vrcp.pop %v1681
        %v1938 = vmul.f32 %v1681, %v1937
        %v1939 = vsub.f32 1.0, %v1938
        %v1940 = vmul.f32 %v1937, %v1939
        %v1941 = vadd.f32 %v1937, %v1940
        %vm1942 = vweird.f32 %v1681
        %vm1943 = vweird.f32 %v1937
        %vm1944 = vmor %vm1942, %vm1943
        %v1945 = vsel %vm1944, %v1937, %v1941
        %v1946 = vand.u32 2147483647, %v1681
        %vm1947 = vcmp.eq.f32.partialorder %v1946, 8.507059e+37
        %v1948 = vand.u32 %v1681, 2147483648
        %v1949 = vor.u32 1.1754944e-38, %v1948
        %v1950 = vsel %vm1947, %v1949, %v1945
        %v1951 = vmul.f32 1.0, %v1950
        %v1952 = vrcp.pop %v1682
        %v1953 = vmul.f32 %v1682, %v1952
        %v1954 = vsub.f32 1.0, %v1953
        %v1955 = vmul.f32 %v1952, %v1954
        %v1956 = vadd.f32 %v1952, %v1955
        %vm1957 = vweird.f32 %v1682
        %vm1958 = vweird.f32 %v1952
        %vm1959 = vmor %vm1957, %vm1958
        %v1960 = vsel %vm1959, %v1952, %v1956
        %v1961 = vand.u32 2147483647, %v1682
        %vm1962 = vcmp.eq.f32.partialorder %v1961, 8.507059e+37
        %v1963 = vand.u32 %v1682, 2147483648
        %v1964 = vor.u32 1.1754944e-38, %v1963
        %v1965 = vsel %vm1962, %v1964, %v1960
        %v1966 = vmul.f32 1.0, %v1965
        %v1967 = vrcp.pop %v1683
        %v1968 = vmul.f32 %v1683, %v1967
        %v1969 = vsub.f32 1.0, %v1968
        %v1970 = vmul.f32 %v1967, %v1969
        %v1971 = vadd.f32 %v1967, %v1970
        %vm1972 = vweird.f32 %v1683
        %vm1973 = vweird.f32 %v1967
        %vm1974 = vmor %vm1972, %vm1973
        %v1975 = vsel %vm1974, %v1967, %v1971
        %v1976 = vand.u32 2147483647, %v1683
        %vm1977 = vcmp.eq.f32.partialorder %v1976, 8.507059e+37
        %v1978 = vand.u32 %v1683, 2147483648
        %v1979 = vor.u32 1.1754944e-38, %v1978
        %v1980 = vsel %vm1977, %v1979, %v1975
        %v1981 = vmul.f32 1.0, %v1980
        %v1982 = vrcp.pop %v1684
        %v1983 = vmul.f32 %v1684, %v1982
        %v1984 = vsub.f32 1.0, %v1983
        %v1985 = vmul.f32 %v1982, %v1984
        %v1986 = vadd.f32 %v1982, %v1985
        %vm1987 = vweird.f32 %v1684
        %vm1988 = vweird.f32 %v1982
        %vm1989 = vmor %vm1987, %vm1988
        %v1990 = vsel %vm1989, %v1982, %v1986
        %v1991 = vand.u32 2147483647, %v1684
        %vm1992 = vcmp.eq.f32.partialorder %v1991, 8.507059e+37
        %v1993 = vand.u32 %v1684, 2147483648
        %v1994 = vor.u32 1.1754944e-38, %v1993
        %v1995 = vsel %vm1992, %v1994, %v1990
        %v1996 = vmul.f32 1.0, %v1995
        %v1997 = vrcp.pop %v1685
        %v1998 = vmul.f32 %v1685, %v1997
        %v1999 = vsub.f32 1.0, %v1998
        %v2000 = vmul.f32 %v1997, %v1999
        %v2001 = vadd.f32 %v1997, %v2000
        %vm2002 = vweird.f32 %v1685
        %vm2003 = vweird.f32 %v1997
        %vm2004 = vmor %vm2002, %vm2003
        %v2005 = vsel %vm2004, %v1997, %v2001
        %v2006 = vand.u32 2147483647, %v1685
        %vm2007 = vcmp.eq.f32.partialorder %v2006, 8.507059e+37
        %v2008 = vand.u32 %v1685, 2147483648
        %v2009 = vor.u32 1.1754944e-38, %v2008
        %v2010 = vsel %vm2007, %v2009, %v2005
        %v2011 = vmul.f32 1.0, %v2010
        %v2012 = vrcp.pop %v1686
        %v2013 = vmul.f32 %v1686, %v2012
        %v2014 = vsub.f32 1.0, %v2013
        %v2015 = vmul.f32 %v2012, %v2014
        %v2016 = vadd.f32 %v2012, %v2015
        %vm2017 = vweird.f32 %v1686
        %vm2018 = vweird.f32 %v2012
        %vm2019 = vmor %vm2017, %vm2018
        %v2020 = vsel %vm2019, %v2012, %v2016
        %v2021 = vand.u32 2147483647, %v1686
        %vm2022 = vcmp.eq.f32.partialorder %v2021, 8.507059e+37
        %v2023 = vand.u32 %v1686, 2147483648
        %v2024 = vor.u32 1.1754944e-38, %v2023
        %v2025 = vsel %vm2022, %v2024, %v2020
        %v2026 = vmul.f32 1.0, %v2025
        %v2027 = vrcp.pop %v1687
        %v2028 = vmul.f32 %v1687, %v2027
        %v2029 = vsub.f32 1.0, %v2028
        %v2030 = vmul.f32 %v2027, %v2029
        %v2031 = vadd.f32 %v2027, %v2030
        %vm2032 = vweird.f32 %v1687
        %vm2033 = vweird.f32 %v2027
        %vm2034 = vmor %vm2032, %vm2033
        %v2035 = vsel %vm2034, %v2027, %v2031
        %v2036 = vand.u32 2147483647, %v1687
        %vm2037 = vcmp.eq.f32.partialorder %v2036, 8.507059e+37
        %v2038 = vand.u32 %v1687, 2147483648
        %v2039 = vor.u32 1.1754944e-38, %v2038
        %v2040 = vsel %vm2037, %v2039, %v2035
        %v2041 = vmul.f32 1.0, %v2040
        %v2042 = vrcp.pop %v1688
        %v2043 = vmul.f32 %v1688, %v2042
        %v2044 = vsub.f32 1.0, %v2043
        %v2045 = vmul.f32 %v2042, %v2044
        %v2046 = vadd.f32 %v2042, %v2045
        %vm2047 = vweird.f32 %v1688
        %vm2048 = vweird.f32 %v2042
        %vm2049 = vmor %vm2047, %vm2048
        %v2050 = vsel %vm2049, %v2042, %v2046
        %v2051 = vand.u32 2147483647, %v1688
        %vm2052 = vcmp.eq.f32.partialorder %v2051, 8.507059e+37
        %v2053 = vand.u32 %v1688, 2147483648
        %v2054 = vor.u32 1.1754944e-38, %v2053
        %v2055 = vsel %vm2052, %v2054, %v2050
        %v2056 = vmul.f32 1.0, %v2055
        %v2057 = vrcp.pop %v1689
        %v2058 = vmul.f32 %v1689, %v2057
        %v2059 = vsub.f32 1.0, %v2058
        %v2060 = vmul.f32 %v2057, %v2059
        %v2061 = vadd.f32 %v2057, %v2060
        %vm2062 = vweird.f32 %v1689
        %vm2063 = vweird.f32 %v2057
        %vm2064 = vmor %vm2062, %vm2063
        %v2065 = vsel %vm2064, %v2057, %v2061
        %v2066 = vand.u32 2147483647, %v1689
        %vm2067 = vcmp.eq.f32.partialorder %v2066, 8.507059e+37
        %v2068 = vand.u32 %v1689, 2147483648
        %v2069 = vor.u32 1.1754944e-38, %v2068
        %v2070 = vsel %vm2067, %v2069, %v2065
        %v2071 = vmul.f32 1.0, %v2070
        %v2072 = vrcp.pop %v1690
        %v2073 = vmul.f32 %v1690, %v2072
        %v2074 = vsub.f32 1.0, %v2073
        %v2075 = vmul.f32 %v2072, %v2074
        %v2076 = vadd.f32 %v2072, %v2075
        %vm2077 = vweird.f32 %v1690
        %vm2078 = vweird.f32 %v2072
        %vm2079 = vmor %vm2077, %vm2078
        %v2080 = vsel %vm2079, %v2072, %v2076
        %v2081 = vand.u32 2147483647, %v1690
        %vm2082 = vcmp.eq.f32.partialorder %v2081, 8.507059e+37
        %v2083 = vand.u32 %v1690, 2147483648
        %v2084 = vor.u32 1.1754944e-38, %v2083
        %v2085 = vsel %vm2082, %v2084, %v2080
        %v2086 = vmul.f32 1.0, %v2085
        %v2087 = vrcp.pop %v1691
        %v2088 = vmul.f32 %v1691, %v2087
        %v2089 = vsub.f32 1.0, %v2088
        %v2090 = vmul.f32 %v2087, %v2089
        %v2091 = vadd.f32 %v2087, %v2090
        %vm2092 = vweird.f32 %v1691
        %vm2093 = vweird.f32 %v2087
        %vm2094 = vmor %vm2092, %vm2093
        %v2095 = vsel %vm2094, %v2087, %v2091
        %v2096 = vand.u32 2147483647, %v1691
        %vm2097 = vcmp.eq.f32.partialorder %v2096, 8.507059e+37
        %v2098 = vand.u32 %v1691, 2147483648
        %v2099 = vor.u32 1.1754944e-38, %v2098
        %v2100 = vsel %vm2097, %v2099, %v2095
        %v2101 = vmul.f32 1.0, %v2100
        %v2102 = vrcp.pop %v1692
        %v2103 = vmul.f32 %v1692, %v2102
        %v2104 = vsub.f32 1.0, %v2103
        %v2105 = vmul.f32 %v2102, %v2104
        %v2106 = vadd.f32 %v2102, %v2105
        %vm2107 = vweird.f32 %v1692
        %vm2108 = vweird.f32 %v2102
        %vm2109 = vmor %vm2107, %vm2108
        %v2110 = vsel %vm2109, %v2102, %v2106
        %v2111 = vand.u32 2147483647, %v1692
        %vm2112 = vcmp.eq.f32.partialorder %v2111, 8.507059e+37
        %v2113 = vand.u32 %v1692, 2147483648
        %v2114 = vor.u32 1.1754944e-38, %v2113
        %v2115 = vsel %vm2112, %v2114, %v2110
        %v2116 = vmul.f32 1.0, %v2115
        %v2117 = vrcp.pop %v1693
        %v2118 = vmul.f32 %v1693, %v2117
        %v2119 = vsub.f32 1.0, %v2118
        %v2120 = vmul.f32 %v2117, %v2119
        %v2121 = vadd.f32 %v2117, %v2120
        %vm2122 = vweird.f32 %v1693
        %vm2123 = vweird.f32 %v2117
        %vm2124 = vmor %vm2122, %vm2123
        %v2125 = vsel %vm2124, %v2117, %v2121
        %v2126 = vand.u32 2147483647, %v1693
        %vm2127 = vcmp.eq.f32.partialorder %v2126, 8.507059e+37
        %v2128 = vand.u32 %v1693, 2147483648
        %v2129 = vor.u32 1.1754944e-38, %v2128
        %v2130 = vsel %vm2127, %v2129, %v2125
        %v2131 = vmul.f32 1.0, %v2130
        %v2132 = vrcp.pop %v1694
        %v2133 = vmul.f32 %v1694, %v2132
        %v2134 = vsub.f32 1.0, %v2133
        %v2135 = vmul.f32 %v2132, %v2134
        %v2136 = vadd.f32 %v2132, %v2135
        %vm2137 = vweird.f32 %v1694
        %vm2138 = vweird.f32 %v2132
        %vm2139 = vmor %vm2137, %vm2138
        %v2140 = vsel %vm2139, %v2132, %v2136
        %v2141 = vand.u32 2147483647, %v1694
        %vm2142 = vcmp.eq.f32.partialorder %v2141, 8.507059e+37
        %v2143 = vand.u32 %v1694, 2147483648
        %v2144 = vor.u32 1.1754944e-38, %v2143
        %v2145 = vsel %vm2142, %v2144, %v2140
        %v2146 = vmul.f32 1.0, %v2145
        %v2147 = vrcp.pop %v1695
        %v2148 = vmul.f32 %v1695, %v2147
        %v2149 = vsub.f32 1.0, %v2148
        %v2150 = vmul.f32 %v2147, %v2149
        %v2151 = vadd.f32 %v2147, %v2150
        %vm2152 = vweird.f32 %v1695
        %vm2153 = vweird.f32 %v2147
        %vm2154 = vmor %vm2152, %vm2153
        %v2155 = vsel %vm2154, %v2147, %v2151
        %v2156 = vand.u32 2147483647, %v1695
        %vm2157 = vcmp.eq.f32.partialorder %v2156, 8.507059e+37
        %v2158 = vand.u32 %v1695, 2147483648
        %v2159 = vor.u32 1.1754944e-38, %v2158
        %v2160 = vsel %vm2157, %v2159, %v2155
        %v2161 = vmul.f32 1.0, %v2160
        %v2162 = vrcp.pop %v1696
        %v2163 = vmul.f32 %v1696, %v2162
        %v2164 = vsub.f32 1.0, %v2163
        %v2165 = vmul.f32 %v2162, %v2164
        %v2166 = vadd.f32 %v2162, %v2165
        %vm2167 = vweird.f32 %v1696
        %vm2168 = vweird.f32 %v2162
        %vm2169 = vmor %vm2167, %vm2168
        %v2170 = vsel %vm2169, %v2162, %v2166
        %v2171 = vand.u32 2147483647, %v1696
        %vm2172 = vcmp.eq.f32.partialorder %v2171, 8.507059e+37
        %v2173 = vand.u32 %v1696, 2147483648
        %v2174 = vor.u32 1.1754944e-38, %v2173
        %v2175 = vsel %vm2172, %v2174, %v2170
        %v2176 = vmul.f32 1.0, %v2175
        %v2177 = vmul.f32 %v957, %v1711
        %v2178 = vmul.f32 %v958, %v1726
        %v2179 = vmul.f32 %v959, %v1741
        %v2180 = vmul.f32 %v960, %v1756
        %v2181 = vmul.f32 %v961, %v1771
        %v2182 = vmul.f32 %v962, %v1786
        %v2183 = vmul.f32 %v963, %v1801
        %v2184 = vmul.f32 %v964, %v1816
        %v2185 = vmul.f32 %v965, %v1831
        %v2186 = vmul.f32 %v966, %v1846
        %v2187 = vmul.f32 %v967, %v1861
        %v2188 = vmul.f32 %v968, %v1876
        %v2189 = vmul.f32 %v969, %v1891
        %v2190 = vmul.f32 %v970, %v1906
        %v2191 = vmul.f32 %v971, %v1921
        %v2192 = vmul.f32 %v972, %v1936
        %v2193 = vmul.f32 %v973, %v1951
        %v2194 = vmul.f32 %v974, %v1966
        %v2195 = vmul.f32 %v975, %v1981
        %v2196 = vmul.f32 %v976, %v1996
        %v2197 = vmul.f32 %v977, %v2011
        %v2198 = vmul.f32 %v978, %v2026
        %v2199 = vmul.f32 %v979, %v2041
        %v2200 = vmul.f32 %v980, %v2056
        %v2201 = vmul.f32 %v981, %v2071
        %v2202 = vmul.f32 %v982, %v2086
        %v2203 = vmul.f32 %v983, %v2101
        %v2204 = vmul.f32 %v984, %v2116
        %v2205 = vmul.f32 %v985, %v2131
        %v2206 = vmul.f32 %v986, %v2146
        %v2207 = vmul.f32 %v987, %v2161
        %v2208 = vmul.f32 %v988, %v2176
        %v2209 = vpack.c.bf16 %v2178, %v2177
        %v2210 = vpack.c.bf16 %v2180, %v2179
        %v2211 = vpack.c.bf16 %v2182, %v2181
        %v2212 = vpack.c.bf16 %v2184, %v2183
        %v2213 = vpack.c.bf16 %v2186, %v2185
        %v2214 = vpack.c.bf16 %v2188, %v2187
        %v2215 = vpack.c.bf16 %v2190, %v2189
        %v2216 = vpack.c.bf16 %v2192, %v2191
        %v2217 = vpack.c.bf16 %v2194, %v2193
        %v2218 = vpack.c.bf16 %v2196, %v2195
        %v2219 = vpack.c.bf16 %v2198, %v2197
        %v2220 = vpack.c.bf16 %v2200, %v2199
        %v2221 = vpack.c.bf16 %v2202, %v2201
        %v2222 = vpack.c.bf16 %v2204, %v2203
        %v2223 = vpack.c.bf16 %v2206, %v2205
        %v2224 = vpack.c.bf16 %v2208, %v2207
        %2225 = vst [vmem:[%s378] sm:$0xff] %v2209
        %2226 = vst [vmem:[%s378 + $0x8] sm:$0xff] %v2210
        %2227 = vst [vmem:[%s378 + $0x10] sm:$0xff] %v2211
        %2228 = vst [vmem:[%s378 + $0x18] sm:$0xff] %v2212
        %2229 = vst [vmem:[%s378 + $0x20] sm:$0xff] %v2213
        %2230 = vst [vmem:[%s378 + $0x28] sm:$0xff] %v2214
        %2231 = vst [vmem:[%s378 + $0x30] sm:$0xff] %v2215
        %2232 = vst [vmem:[%s378 + $0x38] sm:$0xff] %v2216
        %2233 = vst [vmem:[%s378 + $0x40] sm:$0xff] %v2217
        %2234 = vst [vmem:[%s378 + $0x48] sm:$0xff] %v2218
        %2235 = vst [vmem:[%s378 + $0x50] sm:$0xff] %v2219
        %2236 = vst [vmem:[%s378 + $0x58] sm:$0xff] %v2220
        %2237 = vst [vmem:[%s378 + $0x60] sm:$0xff] %v2221
        %2238 = vst [vmem:[%s378 + $0x68] sm:$0xff] %v2222
        %2239 = vst [vmem:[%s378 + $0x70] sm:$0xff] %v2223
        %2240 = vst [vmem:[%s378 + $0x78] sm:$0xff] %v2224
        %v2241 = vld [vmem:[#allocation2] sm:$0xff]
        %v2242 = vld [vmem:[#allocation2 + $0x8] sm:$0xff]
        %v2243 = vld [vmem:[#allocation2 + $0x10] sm:$0xff]
        %v2244 = vld [vmem:[#allocation2 + $0x18] sm:$0xff]
        %v2245 = vld [vmem:[#allocation2 + $0x20] sm:$0xff]
        %v2246 = vld [vmem:[#allocation2 + $0x28] sm:$0xff]
        %v2247 = vld [vmem:[#allocation2 + $0x30] sm:$0xff]
        %v2248 = vld [vmem:[#allocation2 + $0x38] sm:$0xff]
        %v2249 = vld [vmem:[#allocation2 + $0x40] sm:$0xff]
        %v2250 = vld [vmem:[#allocation2 + $0x48] sm:$0xff]
        %v2251 = vld [vmem:[#allocation2 + $0x50] sm:$0xff]
        %v2252 = vld [vmem:[#allocation2 + $0x58] sm:$0xff]
        %v2253 = vld [vmem:[#allocation2 + $0x60] sm:$0xff]
        %v2254 = vld [vmem:[#allocation2 + $0x68] sm:$0xff]
        %v2255 = vld [vmem:[#allocation2 + $0x70] sm:$0xff]
        %v2256 = vld [vmem:[#allocation2 + $0x78] sm:$0xff]
        %v2257 = vadd.f32 %v2177, %v2178
        %2258 = vadd.xlane.f32.xlu0 %v2257
        %v2259 = vpop.xlane.xlu0 %2258
        %v2260 = vadd.f32 %v2179, %v2180
        %2261 = vadd.xlane.f32.xlu0 %v2260
        %v2262 = vpop.xlane.xlu0 %2261
        %v2263 = vadd.f32 %v2181, %v2182
        %2264 = vadd.xlane.f32.xlu0 %v2263
        %v2265 = vpop.xlane.xlu0 %2264
        %v2266 = vadd.f32 %v2183, %v2184
        %2267 = vadd.xlane.f32.xlu0 %v2266
        %v2268 = vpop.xlane.xlu0 %2267
        %v2269 = vadd.f32 %v2185, %v2186
        %2270 = vadd.xlane.f32.xlu0 %v2269
        %v2271 = vpop.xlane.xlu0 %2270
        %v2272 = vadd.f32 %v2187, %v2188
        %2273 = vadd.xlane.f32.xlu0 %v2272
        %v2274 = vpop.xlane.xlu0 %2273
        %v2275 = vadd.f32 %v2189, %v2190
        %2276 = vadd.xlane.f32.xlu0 %v2275
        %v2277 = vpop.xlane.xlu0 %2276
        %v2278 = vadd.f32 %v2191, %v2192
        %2279 = vadd.xlane.f32.xlu0 %v2278
        %v2280 = vpop.xlane.xlu0 %2279
        %v2281 = vadd.f32 %v2193, %v2194
        %2282 = vadd.xlane.f32.xlu0 %v2281
        %v2283 = vpop.xlane.xlu0 %2282
        %v2284 = vadd.f32 %v2195, %v2196
        %2285 = vadd.xlane.f32.xlu0 %v2284
        %v2286 = vpop.xlane.xlu0 %2285
        %v2287 = vadd.f32 %v2197, %v2198
        %2288 = vadd.xlane.f32.xlu0 %v2287
        %v2289 = vpop.xlane.xlu0 %2288
        %v2290 = vadd.f32 %v2199, %v2200
        %2291 = vadd.xlane.f32.xlu0 %v2290
        %v2292 = vpop.xlane.xlu0 %2291
        %v2293 = vadd.f32 %v2201, %v2202
        %2294 = vadd.xlane.f32.xlu0 %v2293
        %v2295 = vpop.xlane.xlu0 %2294
        %v2296 = vadd.f32 %v2203, %v2204
        %2297 = vadd.xlane.f32.xlu0 %v2296
        %v2298 = vpop.xlane.xlu0 %2297
        %v2299 = vadd.f32 %v2205, %v2206
        %2300 = vadd.xlane.f32.xlu0 %v2299
        %v2301 = vpop.xlane.xlu0 %2300
        %v2302 = vadd.f32 %v2207, %v2208
        %2303 = vadd.xlane.f32.xlu0 %v2302
        %v2304 = vpop.xlane.xlu0 %2303
        %v2305 = vadd.f32 %v2241, %v2259
        %v2306 = vadd.f32 %v2242, %v2262
        %v2307 = vadd.f32 %v2243, %v2265
        %v2308 = vadd.f32 %v2244, %v2268
        %v2309 = vadd.f32 %v2245, %v2271
        %v2310 = vadd.f32 %v2246, %v2274
        %v2311 = vadd.f32 %v2247, %v2277
        %v2312 = vadd.f32 %v2248, %v2280
        %v2313 = vadd.f32 %v2249, %v2283
        %v2314 = vadd.f32 %v2250, %v2286
        %v2315 = vadd.f32 %v2251, %v2289
        %v2316 = vadd.f32 %v2252, %v2292
        %v2317 = vadd.f32 %v2253, %v2295
        %v2318 = vadd.f32 %v2254, %v2298
        %v2319 = vadd.f32 %v2255, %v2301
        %v2320 = vadd.f32 %v2256, %v2304
        %vm2321 = vcmask 7168
        %2322 = vst.msk [vmem:[#allocation2] sm:$0xff] %vm2321, %v2305
        %2323 = vst.msk [vmem:[#allocation2 + $0x8] sm:$0xff] %vm2321, %v2306
        %2324 = vst.msk [vmem:[#allocation2 + $0x10] sm:$0xff] %vm2321, %v2307
        %2325 = vst.msk [vmem:[#allocation2 + $0x18] sm:$0xff] %vm2321, %v2308
        %2326 = vst.msk [vmem:[#allocation2 + $0x20] sm:$0xff] %vm2321, %v2309
        %2327 = vst.msk [vmem:[#allocation2 + $0x28] sm:$0xff] %vm2321, %v2310
        %2328 = vst.msk [vmem:[#allocation2 + $0x30] sm:$0xff] %vm2321, %v2311
        %2329 = vst.msk [vmem:[#allocation2 + $0x38] sm:$0xff] %vm2321, %v2312
        %2330 = vst.msk [vmem:[#allocation2 + $0x40] sm:$0xff] %vm2321, %v2313
        %2331 = vst.msk [vmem:[#allocation2 + $0x48] sm:$0xff] %vm2321, %v2314
        %2332 = vst.msk [vmem:[#allocation2 + $0x50] sm:$0xff] %vm2321, %v2315
        %2333 = vst.msk [vmem:[#allocation2 + $0x58] sm:$0xff] %vm2321, %v2316
        %2334 = vst.msk [vmem:[#allocation2 + $0x60] sm:$0xff] %vm2321, %v2317
        %2335 = vst.msk [vmem:[#allocation2 + $0x68] sm:$0xff] %vm2321, %v2318
        %2336 = vst.msk [vmem:[#allocation2 + $0x70] sm:$0xff] %vm2321, %v2319
        %2337 = vst.msk [vmem:[#allocation2 + $0x78] sm:$0xff] %vm2321, %v2320
        %v2338 = vld [vmem:[#allocation2] sm:$0xff]
        %v2339 = vld [vmem:[#allocation2 + $0x8] sm:$0xff]
        %v2340 = vld [vmem:[#allocation2 + $0x10] sm:$0xff]
        %v2341 = vld [vmem:[#allocation2 + $0x18] sm:$0xff]
        %v2342 = vld [vmem:[#allocation2 + $0x20] sm:$0xff]
        %v2343 = vld [vmem:[#allocation2 + $0x28] sm:$0xff]
        %v2344 = vld [vmem:[#allocation2 + $0x30] sm:$0xff]
        %v2345 = vld [vmem:[#allocation2 + $0x38] sm:$0xff]
        %v2346 = vld [vmem:[#allocation2 + $0x40] sm:$0xff]
        %v2347 = vld [vmem:[#allocation2 + $0x48] sm:$0xff]
        %v2348 = vld [vmem:[#allocation2 + $0x50] sm:$0xff]
        %v2349 = vld [vmem:[#allocation2 + $0x58] sm:$0xff]
        %v2350 = vld [vmem:[#allocation2 + $0x60] sm:$0xff]
        %v2351 = vld [vmem:[#allocation2 + $0x68] sm:$0xff]
        %v2352 = vld [vmem:[#allocation2 + $0x70] sm:$0xff]
        %v2353 = vld [vmem:[#allocation2 + $0x78] sm:$0xff]
        %2354 = vst.msk [vmem:[%s401] sm:$0xff] %vm2321, %v2338
        %2355 = vst.msk [vmem:[%s401 + $0x8] sm:$0xff] %vm2321, %v2339
        %2356 = vst.msk [vmem:[%s401 + $0x10] sm:$0xff] %vm2321, %v2340
        %2357 = vst.msk [vmem:[%s401 + $0x18] sm:$0xff] %vm2321, %v2341
        %2358 = vst.msk [vmem:[%s401 + $0x20] sm:$0xff] %vm2321, %v2342
        %2359 = vst.msk [vmem:[%s401 + $0x28] sm:$0xff] %vm2321, %v2343
        %2360 = vst.msk [vmem:[%s401 + $0x30] sm:$0xff] %vm2321, %v2344
        %2361 = vst.msk [vmem:[%s401 + $0x38] sm:$0xff] %vm2321, %v2345
        %2362 = vst.msk [vmem:[%s401 + $0x40] sm:$0xff] %vm2321, %v2346
        %2363 = vst.msk [vmem:[%s401 + $0x48] sm:$0xff] %vm2321, %v2347
        %2364 = vst.msk [vmem:[%s401 + $0x50] sm:$0xff] %vm2321, %v2348
        %2365 = vst.msk [vmem:[%s401 + $0x58] sm:$0xff] %vm2321, %v2349
        %2366 = vst.msk [vmem:[%s401 + $0x60] sm:$0xff] %vm2321, %v2350
        %2367 = vst.msk [vmem:[%s401 + $0x68] sm:$0xff] %vm2321, %v2351
        %2368 = vst.msk [vmem:[%s401 + $0x70] sm:$0xff] %vm2321, %v2352
        %2369 = vst.msk [vmem:[%s401 + $0x78] sm:$0xff] %vm2321, %v2353
        %s2370 = sand.u32 %s243, 1
        %s2371 = scalar_lea.sflag [#allocation4], %s2370
        %s2372 = sand.u32 %s243, 1
        %s2373 = smul.addr %s2372, 128
        %s2374 = scalar_lea.vmem [#allocation3], %s2373
        %p2375 = scmp.lt.s32.totalorder %s29, 1
        %s2376 = scalar_select %p2375, %s29, 1
        %s2377 = smul.addr %s2376, 16
        %s2378 = smul.addr %s2377, 8
        %s2379 = scalar_lea.vmem %s10, %s2378
        // Predicated region
        $region61: #{tpu_custom_call.1} parent=55 // pred_check
          %p2380 = pneg %p253
        $region62: #{tpu_custom_call.1} parent=55 // pred_check_branch
          %2382 = sbr.rel (%p2380) target = $region64
        $region63: #{tpu_custom_call.1} parent=55 // pred_region
          %s2383 = smul.u32 2, %s30
          %2385 = vsyncadd %s2371, 0
          %s2386 = smul.addr %s29, 32
          %s2387 = sadd.s32 %s2383, %s2386
          %s2388 = smul.addr %s2387, 4
          %s2389 = scalar_lea.hbm %s9, %s2388
          %s2390 = sshll.u32 %s2374, 4
          %s2391 = int_to_ptr.vmem [resolvable:$true] %s2390
          %s2392 = sshll.u32 %s2389, 4
          %s2393 = int_to_ptr.hbm [resolvable:$true] %s2392
          %2398 = dma.vmem_to_hbm [thread:$0]  %s2391, 2048, %s2393, %s2371, 128, 128, 8
        $region64: #{tpu_custom_call.1} parent=55 // pred_fallthru
          _
        // Predicated region
        $region65: #{tpu_custom_call.1} parent=55 // pred_check
          %p2399 = pneg %p279
        $region66: #{tpu_custom_call.1} parent=55 // pred_check_branch
          %2401 = sbr.rel (%p2399) target = $region68
        $region67: #{tpu_custom_call.1} parent=55 // pred_region
          _
        $region68: #{tpu_custom_call.1} parent=55 // pred_fallthru
          _
      $region56: #{tpu_custom_call.1} parent=5 // pred_fallthru
        _
      %p2402 = scmp.le.s32.totalorder 2, %s20
      // Predicated region
      $region69: #{tpu_custom_call.1} parent=5 // pred_check
        %p2403 = pneg %p2402
      $region70: #{tpu_custom_call.1} parent=5 // pred_check_branch
        %2405 = sbr.rel (%p2403) target = $region72
      $region71: #{tpu_custom_call.1} parent=5 // pred_region
        %s2406 = ssub.s32 %s20, 2
        // Predicated region
        $region73: #{tpu_custom_call.1} parent=71 // pred_check
          %p2407 = pneg %p259
        $region74: #{tpu_custom_call.1} parent=71 // pred_check_branch
          %2409 = sbr.rel (%p2407) target = $region76
        $region75: #{tpu_custom_call.1} parent=71 // pred_region
          %s2410 = sand.u32 %s244, 1
          %s2411 = scalar_lea.sflag [#allocation4], %s2410
          %s2412 = sand.u32 %s244, 1
          %s2413 = smul.addr %s2412, 128
          %s2414 = scalar_lea.vmem [#allocation3], %s2413
          %2416 = dma.done %s2411, 2048
        $region76: #{tpu_custom_call.1} parent=71 // pred_fallthru
          _
        // Predicated region
        $region77: #{tpu_custom_call.1} parent=71 // pred_check
          %p2417 = pneg %p285
        $region78: #{tpu_custom_call.1} parent=71 // pred_check_branch
          %2419 = sbr.rel (%p2417) target = $region80
        $region79: #{tpu_custom_call.1} parent=71 // pred_region
          %p2420 = scmp.lt.s32.totalorder %s31, 1
          %s2421 = scalar_select %p2420, %s31, 1
          %s2422 = smul.addr %s2421, 16
          %s2423 = smul.addr %s2422, 8
          %s2424 = scalar_lea.vmem %s10, %s2423
        $region80: #{tpu_custom_call.1} parent=71 // pred_fallthru
          _
      $region72: #{tpu_custom_call.1} parent=5 // pred_fallthru
        _
    $region6: #{tpu_custom_call.1} parent=1 // loop_footer
      %s24 = sadd.s32 1, %s20
    $region7: #{tpu_custom_call.1} parent=1 // loop_footer_branch
      %19 = sbr.rel target = $region3
    $region8: #{tpu_custom_call.1} parent=1 // loop_exit
      _
    %2425 = vsyncpa [#allocation4], 1
    %s2426 = scalar_lea.sflag [#allocation4], 1
    %2427 = vsyncpa %s2426, 1

</llo_original>
